<compile_context>
chip_gen: v7x
topology: tpu7x:2x2x1
jax: 0.10.0
libtpu: 0.0.40
codegen_flags: <defaults>
</compile_context>

<pallas_src>
import functools

import jax
import jax.numpy as jnp
from jax.experimental import pallas as pl
from jax.experimental.pallas import tpu as pltpu


def _depth_to_space_kernel(x_ref, o_ref, *, bs, c_blk, H, W):
    # x_ref: (bs, bs, c_blk, H, W)  -- the bs*bs input planes per output channel
    # o_ref: (c_blk, H, bs*W*bs)    -- lane-flattened output rows:
    #        o_ref[c, h, b1*W*bs + w*bs + b2] == out[c, h*bs + b1, w*bs + b2]
    WB = W * bs
    lane_aligned = (WB % 128 == 0)

    def channel_body(c, carry):
        if lane_aligned:
            # Incremental, aligned lane-range stores: only ~2 planes live at once.
            for b1 in range(bs):
                cols = [x_ref[b1, b2, c, :, :] for b2 in range(bs)]   # (H, W) each
                wi = jnp.stack(cols, axis=-1).reshape(H, WB)          # lane interleave
                o_ref[c, :, pl.ds(b1 * WB, WB)] = wi
        else:
            # Small / unaligned W*bs: partial-lane stores would be masked anyway, so
            # assemble the full lane-dense row and store it once (full extent).
            parts = []
            for b1 in range(bs):
                cols = [x_ref[b1, b2, c, :, :] for b2 in range(bs)]
                parts.append(jnp.stack(cols, axis=-1).reshape(H, WB))
            o_ref[c, :, :] = jnp.concatenate(parts, axis=-1)          # (H, bs*WB)
        return carry

    if c_blk <= 8:
        # Fully static indexing for small channel blocks.
        for c in range(c_blk):
            channel_body(c, 0)
    else:
        jax.lax.fori_loop(0, c_blk, channel_body, 0)


def _pick_c_blk(C_out, N, bs, H, W, itemsize):
    # Single-buffered in+out bytes per channel of the block.
    per_chan = 2 * bs * bs * H * W * itemsize
    # Conservative cross-generation budget: <= 8 MiB single-buffered
    # (=> <= 16 MiB double-buffered) fits v5e/v6e/v7x scoped VMEM with headroom.
    budget = 8 * 1024 * 1024
    max_cblk = max(1, budget // per_chan)
    divisors = [d for d in range(1, C_out + 1) if C_out % d == 0]
    fitting = [d for d in divisors if d <= max_cblk] or [1]
    c_blk = fitting[-1]
    # Keep >=2 grid steps when possible so v7x's two TensorCores both get work.
    if N * (C_out // c_blk) < 2:
        smaller = [d for d in fitting if C_out // d >= 2]
        if smaller:
            c_blk = smaller[-1]
    return c_blk


def depth_to_space(x: jax.Array, block_size: int) -> jax.Array:
    """Pallas implementation of DepthToSpace.forward for NCHW input."""
    N, C, H, W = x.shape
    bs = block_size
    assert C % (bs * bs) == 0, "C must be divisible by block_size**2"
    C_out = C // (bs * bs)
    WB = W * bs
    itemsize = jnp.dtype(x.dtype).itemsize

    c_blk = _pick_c_blk(C_out, N, bs, H, W, itemsize)

    # Free view (glue): split channel axis into (bs, bs, C_out) so the BlockSpec
    # fetches bs^2 contiguous C_blk*H*W bursts per grid step.
    x6 = x.reshape(N, bs, bs, C_out, H, W)

    kernel = functools.partial(_depth_to_space_kernel, bs=bs, c_blk=c_blk, H=H, W=W)

    grid = (N, C_out // c_blk)
    cost = pl.CostEstimate(
        flops=0,
        transcendentals=0,
        bytes_accessed=2 * N * C * H * W * itemsize,
    )

    out_flat = pl.pallas_call(
        kernel,
        out_shape=jax.ShapeDtypeStruct((N, C_out, H, bs * WB), x.dtype),
        grid=grid,
        in_specs=[
            # kernel sees (bs, bs, c_blk, H, W); N dim is squeezed out.
            pl.BlockSpec(
                (None, bs, bs, c_blk, H, W),
                lambda n, cb: (n, 0, 0, cb, 0, 0),
            ),
        ],
        out_specs=pl.BlockSpec(
            (None, c_blk, H, bs * WB),
            lambda n, cb: (n, cb, 0, 0),
        ),
        compiler_params=pltpu.CompilerParams(
            dimension_semantics=("parallel", "parallel"),
            vmem_limit_bytes=32 * 1024 * 1024,
        ),
        cost_estimate=cost,
    )(x6)

    # Free contiguous reshape back to the NCHW pixel-shuffled layout.
    return out_flat.reshape(N, C_out, H * bs, W * bs)


def _reference_depth_to_space(x: jax.Array, block_size: int) -> jax.Array:
    """Pure-JAX transcription of the PyTorch forward (for verification)."""
    N, C, H, W = x.shape
    bs = block_size
    x = x.reshape(N, bs, bs, C // bs**2, H, W)
    x = jnp.transpose(x, (0, 3, 4, 1, 5, 2))
    return x.reshape(N, C // bs**2, H * bs, W * bs)


if __name__ == "__main__":
    key = jax.random.PRNGKey(0)
    tests = [
        ((2, 4, 16, 16), 2),    # original demo shape (C_out=1, fallback store path)
        ((2, 16, 16, 16), 2),   # channel-blocked (C_blk=4), static unroll
        ((2, 8, 8, 64), 2),     # W*bs = 128 -> aligned incremental-store path
        ((2, 64, 8, 16), 2),    # C_blk=16 -> fori_loop channel path
        ((2, 128, 8, 64), 2),   # fori_loop + aligned incremental stores
        ((1, 9, 8, 16), 3),     # block_size = 3
    ]
    for shape, bsz in tests:
        key, sub = jax.random.split(key)
        x = jax.random.normal(sub, shape, dtype=jnp.float32)
        out = jax.block_until_ready(depth_to_space(x, bsz))
        ref = _reference_depth_to_space(x, bsz)
        assert out.shape == ref.shape, (shape, bsz, out.shape, ref.shape)
        assert out.dtype == ref.dtype, (shape, bsz, out.dtype, ref.dtype)
        assert bool(jnp.array_equal(out, ref)), f"mismatch for {shape}, bs={bsz}"

    print("KERNEL_OK")
</pallas_src>

<mosaic_0001>
module attributes {stable_mosaic.version = 11 : i64} {
  func.func @_depth_to_space_kernel(%arg0: i32, %arg1: i32, %arg2: memref<1x2x2x1x16x16xf32, #tpu.memory_space<vmem>>, %arg3: memref<1x1x16x64xf32, #tpu.memory_space<vmem>>) attributes {dimension_semantics = [#tpu.dimension_semantics<parallel>, #tpu.dimension_semantics<parallel>], iteration_bounds = array<i64: 2, 1>, scalar_prefetch = 0 : i64, scratch_operands = 0 : i64, tpu.core_type = #tpu.core_type<tc>, window_params = [{transform_indices = @transform_0, window_bounds = array<i64: 1, 2, 2, 1, 16, 16>}, {transform_indices = @transform_1, window_bounds = array<i64: 1, 1, 16, 64>}]} {
    %c0 = arith.constant 0 : index
    %c0_0 = arith.constant 0 : index
    %c0_1 = arith.constant 0 : index
    %c0_2 = arith.constant 0 : index
    %c0_3 = arith.constant 0 : index
    %c0_4 = arith.constant 0 : index
    %0 = vector.load %arg2[%c0, %c0_0, %c0_1, %c0_2, %c0_3, %c0_4] : memref<1x2x2x1x16x16xf32, #tpu.memory_space<vmem>>, vector<1x1x1x1x16x16xf32>
    %1 = vector.shape_cast %0 : vector<1x1x1x1x16x16xf32> to vector<16x16xf32>
    %c0_5 = arith.constant 0 : index
    %c0_6 = arith.constant 0 : index
    %c1 = arith.constant 1 : index
    %c0_7 = arith.constant 0 : index
    %c0_8 = arith.constant 0 : index
    %c0_9 = arith.constant 0 : index
    %2 = vector.load %arg2[%c0_5, %c0_6, %c1, %c0_7, %c0_8, %c0_9] : memref<1x2x2x1x16x16xf32, #tpu.memory_space<vmem>>, vector<1x1x1x1x16x16xf32>
    %3 = vector.shape_cast %2 : vector<1x1x1x1x16x16xf32> to vector<16x16xf32>
    %4 = vector.shape_cast %1 : vector<16x16xf32> to vector<16x16x1xf32>
    %5 = vector.shape_cast %3 : vector<16x16xf32> to vector<16x16x1xf32>
    %6 = tpu.concatenate %4, %5 in 2 : vector<16x16x1xf32>, vector<16x16x1xf32> -> vector<16x16x2xf32>
    %7 = vector.shape_cast %6 : vector<16x16x2xf32> to vector<16x32xf32>
    %c0_10 = arith.constant 0 : index
    %c1_11 = arith.constant 1 : index
    %c0_12 = arith.constant 0 : index
    %c0_13 = arith.constant 0 : index
    %c0_14 = arith.constant 0 : index
    %c0_15 = arith.constant 0 : index
    %8 = vector.load %arg2[%c0_10, %c1_11, %c0_12, %c0_13, %c0_14, %c0_15] : memref<1x2x2x1x16x16xf32, #tpu.memory_space<vmem>>, vector<1x1x1x1x16x16xf32>
    %9 = vector.shape_cast %8 : vector<1x1x1x1x16x16xf32> to vector<16x16xf32>
    %c0_16 = arith.constant 0 : index
    %c1_17 = arith.constant 1 : index
    %c1_18 = arith.constant 1 : index
    %c0_19 = arith.constant 0 : index
    %c0_20 = arith.constant 0 : index
    %c0_21 = arith.constant 0 : index
    %10 = vector.load %arg2[%c0_16, %c1_17, %c1_18, %c0_19, %c0_20, %c0_21] : memref<1x2x2x1x16x16xf32, #tpu.memory_space<vmem>>, vector<1x1x1x1x16x16xf32>
    %11 = vector.shape_cast %10 : vector<1x1x1x1x16x16xf32> to vector<16x16xf32>
    %12 = vector.shape_cast %9 : vector<16x16xf32> to vector<16x16x1xf32>
    %13 = vector.shape_cast %11 : vector<16x16xf32> to vector<16x16x1xf32>
    %14 = tpu.concatenate %12, %13 in 2 : vector<16x16x1xf32>, vector<16x16x1xf32> -> vector<16x16x2xf32>
    %15 = vector.shape_cast %14 : vector<16x16x2xf32> to vector<16x32xf32>
    %16 = tpu.concatenate %7, %15 in 1 : vector<16x32xf32>, vector<16x32xf32> -> vector<16x64xf32>
    %c0_22 = arith.constant 0 : index
    %c0_23 = arith.constant 0 : index
    %c0_24 = arith.constant 0 : index
    %c0_25 = arith.constant 0 : index
    %17 = vector.load %arg3[%c0_22, %c0_23, %c0_24, %c0_25] : memref<1x1x16x64xf32, #tpu.memory_space<vmem>>, vector<1x1x16x64xf32>
    %18 = vector.shape_cast %17 : vector<1x1x16x64xf32> to vector<16x64xf32>
    %19 = vector.shape_cast %16 : vector<16x64xf32> to vector<1x1x16x64xf32>
    tpu.vector_store %arg3[%c0_22, %c0_23, %c0_24, %c0_25], %19 {strides = array<i32>} : memref<1x1x16x64xf32, #tpu.memory_space<vmem>>, vector<1x1x16x64xf32>,
    return
  }
  func.func @transform_0(%arg0: i32, %arg1: i32) -> (i32, i32, i32, i32, i32, i32) {
    %c0_i32 = arith.constant 0 : i32
    %c0_i32_0 = arith.constant 0 : i32
    %c0_i32_1 = arith.constant 0 : i32
    %c0_i32_2 = arith.constant 0 : i32
    %c0_i32_3 = arith.constant 0 : i32
    return %arg0, %c0_i32, %c0_i32_0, %arg1, %c0_i32_1, %c0_i32_2 : i32, i32, i32, i32, i32, i32
  }
  func.func @transform_1(%arg0: i32, %arg1: i32) -> (i32, i32, i32, i32) {
    %c0_i32 = arith.constant 0 : i32
    %c0_i32_0 = arith.constant 0 : i32
    %c0_i32_1 = arith.constant 0 : i32
    return %arg0, %arg1, %c0_i32, %c0_i32_0 : i32, i32, i32, i32
  }
}

</mosaic_0001>

<llo_original>
// kernel: tpu_custom_call.1
$region0: #{tpu_custom_call.1}
  #allocation0 [shape = 'u32[]', space=smem, size = 0x4, offset = 0x4, fixed_abs, tag = 'smem constant byte address 0x4 - core index']
  #allocation1 [shape = 'u32[144,128]{1,0:T(1,128)}', space=vmem, size = 0x12000, scoped, tag = 'internal scratch']
  %s0 = inlined_call_operand.hbm [shape: f32[2,2,2,1,16,16], index: 0, kind: input, shape index: {}]
  %s1 = inlined_call_operand.hbm [shape: f32[2,1,16,64], index: 1, kind: output, shape index: {}]
  %s2 = sld [smem:[#allocation0]]
  $region41: #{tpu_custom_call.1} parent=0
    _
  %s4 = ssub.s32 1, %s2
  %s5 = scalar_select 0, %s4, %s2
  $region1: #{tpu_custom_call.1} parent=0
    #allocation2 [shape = 'u8[65536]{0}', space=vmem, size = 0x10000, scoped, tag = 'input window, operand 0']
    #allocation3 [shape = 's32[2]{0}', space=sflag, size = 0x8, scoped, tag = 'scoped memory for tpu_custom_call.1']
    #allocation4 [shape = 's32[2]{0}', space=sflag, size = 0x8, scoped, tag = 'scoped memory for tpu_custom_call.1']
    #allocation5 [shape = 'u8[16384]{0}', space=vmem, size = 0x4000, scoped, tag = 'output window, operand 0']
    %6 = vsyncpa [#allocation3], 0
    %s7 = scalar_lea.sflag [#allocation3], 1
    %8 = vsyncpa %s7, 0
    %9 = vsyncpa [#allocation4], 0
    %s10 = scalar_lea.sflag [#allocation4], 1
    %11 = vsyncpa %s10, 0
    loop: start=0, step=1, limit=4
    $region2: #{tpu_custom_call.1} parent=1 // loop_pre_header
      _
    $region3: #{tpu_custom_call.1} parent=1 // loop_header
      %s13 = sphi 0, %s17
      %p14 = scmp.ge.s32.totalorder %s13, 4
      %s20 = sphi 0, %s32
      %s21 = sphi 0, %s28
      %s22 = sphi 0, %s20
      %s23 = sphi 0, %s21
      %s24 = sphi 0, %s22
      %s25 = sphi 0, %s23
      %s37 = sphi 0, %s39
      %s40 = sphi 0, %s37
      %s41 = sphi 0, %s40
      %s57 = sphi 0, %s41
      %s65 = sphi 0, %s67
      %s68 = sphi 0, %s65
      %s69 = sphi 0, %s68
      %s85 = sphi 0, %s69
    $region4: #{tpu_custom_call.1} parent=1 // loop_header_branch
      %16 = sbr.rel (%p14) target = $region8
    $region5: #{tpu_custom_call.1} parent=1 // loop_body
      %s18 = ssub.s32 %s13, 1
      %s19 = ssub.s32 %s13, 2
      %s26 = sadd.s32 1, %s21
      %p27 = scmp.ge.s32.totalorder %s26, 1
      %s28 = scalar_select %p27, 0, %s26
      %s29 = sadd.s32 1, %s20
      %s30 = scalar_select %p27, %s29, %s20
      %p31 = scmp.ge.s32.totalorder %s30, 2
      %s32 = scalar_select %p31, 0, %s30
      %s33 = ssub.s32 %s20, %s32
      %s34 = ssub.s32 %s21, %s28
      %s35 = sor.u32 %s33, %s34
      %p36 = scmp.eq.s32.totalorder %s35, 0
      %s38 = sadd.s32 %s37, 1
      %s39 = scalar_select %p36, %s37, %s38
      %p42 = pneg %p36
      %p43 = scmp.eq.s32.totalorder %s13, 1
      %p44 = por %p42, %p43
      %p45 = scmp.ne.s32.totalorder %s37, %s40
      %p46 = scmp.eq.s32.totalorder %s13, 0
      %p47 = por %p45, %p46
      %p48 = scmp.ne.s32.totalorder %s37, %s40
      %p49 = scmp.eq.s32.totalorder %s18, 1
      %p50 = por %p48, %p49
      %p51 = scmp.ne.s32.totalorder %s40, %s41
      %p52 = scmp.eq.s32.totalorder %s18, 0
      %p53 = por %p51, %p52
      %p54 = scmp.ne.s32.totalorder %s40, %s41
      %p55 = scmp.eq.s32.totalorder %s19, 1
      %p56 = por %p54, %p55
      %p58 = scmp.ne.s32.totalorder %s41, %s57
      %p59 = scmp.eq.s32.totalorder %s19, 0
      %p60 = por %p58, %p59
      %s61 = ssub.s32 %s20, %s32
      %s62 = ssub.s32 %s21, %s28
      %s63 = sor.u32 %s61, %s62
      %p64 = scmp.eq.s32.totalorder %s63, 0
      %s66 = sadd.s32 %s65, 1
      %s67 = scalar_select %p64, %s65, %s66
      %p70 = pneg %p64
      %p71 = scmp.eq.s32.totalorder %s13, 1
      %p72 = por %p70, %p71
      %p73 = scmp.ne.s32.totalorder %s65, %s68
      %p74 = scmp.eq.s32.totalorder %s13, 0
      %p75 = por %p73, %p74
      %p76 = scmp.ne.s32.totalorder %s65, %s68
      %p77 = scmp.eq.s32.totalorder %s18, 1
      %p78 = por %p76, %p77
      %p79 = scmp.ne.s32.totalorder %s68, %s69
      %p80 = scmp.eq.s32.totalorder %s18, 0
      %p81 = por %p79, %p80
      %p82 = scmp.ne.s32.totalorder %s68, %s69
      %p83 = scmp.eq.s32.totalorder %s19, 1
      %p84 = por %p82, %p83
      %p86 = scmp.ne.s32.totalorder %s69, %s85
      %p87 = scmp.eq.s32.totalorder %s19, 0
      %p88 = por %p86, %p87
      %p89 = scmp.le.s32.totalorder 1, %s13
      %p90 = scmp.lt.s32.totalorder %s13, 3
      %p91 = pnand %p89, %p90
      %p92 = pneg %p91
      // Predicated region
      $region9: #{tpu_custom_call.1} parent=5 // pred_check
        _
      $region10: #{tpu_custom_call.1} parent=5 // pred_check_branch
        %94 = sbr.rel (%p91) target = $region12
      $region11: #{tpu_custom_call.1} parent=5 // pred_region
        %s95 = ssub.s32 %s13, 1
      $region12: #{tpu_custom_call.1} parent=5 // pred_fallthru
        _
      %p96 = scmp.lt.s32.totalorder %s13, 2
      // Predicated region
      $region13: #{tpu_custom_call.1} parent=5 // pred_check
        %p97 = pneg %p96
      $region14: #{tpu_custom_call.1} parent=5 // pred_check_branch
        %99 = sbr.rel (%p97) target = $region16
      $region15: #{tpu_custom_call.1} parent=5 // pred_region
        // Predicated region
        $region17: #{tpu_custom_call.1} parent=15 // pred_check
          %p100 = pneg %p47
        $region18: #{tpu_custom_call.1} parent=15 // pred_check_branch
          %102 = sbr.rel (%p100) target = $region20
        $region19: #{tpu_custom_call.1} parent=15 // pred_region
          %s103 = sand.u32 %s37, 1
          %s104 = scalar_lea.sflag [#allocation3], %s103
          %s105 = sand.u32 %s37, 1
          %s106 = smul.addr %s105, 64
          %s107 = scalar_lea.vmem [#allocation2], %s106
          %s109 = ssub.s32 1024, 1024
          %110 = vsyncadd %s104, %s109
          %s111 = smul.addr %s21, 2
          %s112 = smul.addr %s20, 8
          %s113 = sadd.s32 %s111, %s112
          %s114 = smul.addr %s113, 128
          %s115 = scalar_lea.hbm %s0, %s114
          %s116 = sshll.u32 %s107, 4
          %s117 = int_to_ptr.vmem [resolvable:$true] %s116
          %122 = dma.hbm_to_vmem [thread:$0]  %s115, 1024, %s117, %s104, 128, 128, 8
        $region20: #{tpu_custom_call.1} parent=15 // pred_fallthru
          _
      $region16: #{tpu_custom_call.1} parent=5 // pred_fallthru
        _
      %p123 = scmp.le.s32.totalorder 1, %s13
      %p124 = scmp.lt.s32.totalorder %s13, 3
      %p125 = pnand %p123, %p124
      %p126 = pneg %p125
      // Predicated region
      $region21: #{tpu_custom_call.1} parent=5 // pred_check
        _
      $region22: #{tpu_custom_call.1} parent=5 // pred_check_branch
        %128 = sbr.rel (%p125) target = $region24
      $region23: #{tpu_custom_call.1} parent=5 // pred_region
        %s129 = ssub.s32 %s13, 1
        %s130 = sand.u32 %s40, 1
        %s131 = scalar_lea.sflag [#allocation3], %s130
        %s132 = sand.u32 %s40, 1
        %s133 = smul.addr %s132, 64
        %s134 = scalar_lea.vmem [#allocation2], %s133
        // Predicated region
        $region25: #{tpu_custom_call.1} parent=23 // pred_check
          %p135 = pneg %p53
        $region26: #{tpu_custom_call.1} parent=23 // pred_check_branch
          %137 = sbr.rel (%p135) target = $region28
        $region27: #{tpu_custom_call.1} parent=23 // pred_region
          %138 = dma.done %s131, 1024
        $region28: #{tpu_custom_call.1} parent=23 // pred_fallthru
          _
        %s139 = sand.u32 %s40, 1
        %s140 = scalar_lea.sflag [#allocation3], %s139
        %s141 = sand.u32 %s40, 1
        %s142 = smul.addr %s141, 64
        %s143 = scalar_lea.vmem [#allocation2], %s142
        %p144 = pneg %p53
        %p145 = pneg %p50
        %p146 = pneg %p81
        %p147 = pneg %p78
        %s148 = sand.u32 %s68, 1
        %s149 = scalar_lea.sflag [#allocation4], %s148
        %s150 = sand.u32 %s68, 1
        %s151 = smul.addr %s150, 16
        %s152 = scalar_lea.vmem [#allocation5], %s151
        %v153 = vld [vmem:[%s134] sm:$0xff]
        %v154 = vld [vmem:[%s134 + $0x8] sm:$0xff]
        %s155 = scalar_lea.vmem %s134, 16 [#allocation2]
        %v156 = vld [vmem:[%s155] sm:$0xff]
        %v157 = vld [vmem:[%s155 + $0x8] sm:$0xff]
        %v158 = vlaneseq
        %v159 = vshrl.u32 %v158, 7
        %v160 = vsub.s32 0, %v159
        %v161 = vrot.slane %v153, %v160
        %163 = vbcast.lane.b32.xlu0 %v161, 256
        %v164 = vpop.permute.xlu0 %163
        %s166 = sor.u32 256, 8
        %167 = vbcast.lane.b32.xlu0 %v161, %s166
        %v168 = vpop.permute.xlu0 %167
        %v169 = vlaneseq
        %v170 = vshrl.u32 %v169, 7
        %v171 = vsub.s32 1, %v170
        %v172 = vrot.slane %v153, %v171
        %174 = vbcast.lane.b32.xlu0 %v172, 256
        %v175 = vpop.permute.xlu0 %174
        %s177 = sor.u32 256, 8
        %178 = vbcast.lane.b32.xlu0 %v172, %s177
        %v179 = vpop.permute.xlu0 %178
        %v180 = vlaneseq
        %v181 = vshrl.u32 %v180, 7
        %v182 = vsub.s32 2, %v181
        %v183 = vrot.slane %v153, %v182
        %185 = vbcast.lane.b32.xlu0 %v183, 256
        %v186 = vpop.permute.xlu0 %185
        %s188 = sor.u32 256, 8
        %189 = vbcast.lane.b32.xlu0 %v183, %s188
        %v190 = vpop.permute.xlu0 %189
        %v191 = vlaneseq
        %v192 = vshrl.u32 %v191, 7
        %v193 = vsub.s32 3, %v192
        %v194 = vrot.slane %v153, %v193
        %196 = vbcast.lane.b32.xlu0 %v194, 256
        %v197 = vpop.permute.xlu0 %196
        %s199 = sor.u32 256, 8
        %200 = vbcast.lane.b32.xlu0 %v194, %s199
        %v201 = vpop.permute.xlu0 %200
        %v202 = vlaneseq
        %v203 = vshrl.u32 %v202, 7
        %v204 = vsub.s32 4, %v203
        %v205 = vrot.slane %v153, %v204
        %207 = vbcast.lane.b32.xlu0 %v205, 256
        %v208 = vpop.permute.xlu0 %207
        %s210 = sor.u32 256, 8
        %211 = vbcast.lane.b32.xlu0 %v205, %s210
        %v212 = vpop.permute.xlu0 %211
        %v213 = vlaneseq
        %v214 = vshrl.u32 %v213, 7
        %v215 = vsub.s32 5, %v214
        %v216 = vrot.slane %v153, %v215
        %218 = vbcast.lane.b32.xlu0 %v216, 256
        %v219 = vpop.permute.xlu0 %218
        %s221 = sor.u32 256, 8
        %222 = vbcast.lane.b32.xlu0 %v216, %s221
        %v223 = vpop.permute.xlu0 %222
        %v224 = vlaneseq
        %v225 = vshrl.u32 %v224, 7
        %v226 = vsub.s32 6, %v225
        %v227 = vrot.slane %v153, %v226
        %229 = vbcast.lane.b32.xlu0 %v227, 256
        %v230 = vpop.permute.xlu0 %229
        %s232 = sor.u32 256, 8
        %233 = vbcast.lane.b32.xlu0 %v227, %s232
        %v234 = vpop.permute.xlu0 %233
        %v235 = vlaneseq
        %v236 = vshrl.u32 %v235, 7
        %v237 = vsub.s32 7, %v236
        %v238 = vrot.slane %v153, %v237
        %240 = vbcast.lane.b32.xlu0 %v238, 256
        %v241 = vpop.permute.xlu0 %240
        %s243 = sor.u32 256, 8
        %244 = vbcast.lane.b32.xlu0 %v238, %s243
        %v245 = vpop.permute.xlu0 %244
        %v246 = vlaneseq
        %v247 = vshrl.u32 %v246, 7
        %v248 = vsub.s32 0, %v247
        %v249 = vrot.slane %v154, %v248
        %251 = vbcast.lane.b32.xlu0 %v249, 256
        %v252 = vpop.permute.xlu0 %251
        %s254 = sor.u32 256, 8
        %255 = vbcast.lane.b32.xlu0 %v249, %s254
        %v256 = vpop.permute.xlu0 %255
        %v257 = vlaneseq
        %v258 = vshrl.u32 %v257, 7
        %v259 = vsub.s32 1, %v258
        %v260 = vrot.slane %v154, %v259
        %262 = vbcast.lane.b32.xlu0 %v260, 256
        %v263 = vpop.permute.xlu0 %262
        %s265 = sor.u32 256, 8
        %266 = vbcast.lane.b32.xlu0 %v260, %s265
        %v267 = vpop.permute.xlu0 %266
        %v268 = vlaneseq
        %v269 = vshrl.u32 %v268, 7
        %v270 = vsub.s32 2, %v269
        %v271 = vrot.slane %v154, %v270
        %273 = vbcast.lane.b32.xlu0 %v271, 256
        %v274 = vpop.permute.xlu0 %273
        %s276 = sor.u32 256, 8
        %277 = vbcast.lane.b32.xlu0 %v271, %s276
        %v278 = vpop.permute.xlu0 %277
        %v279 = vlaneseq
        %v280 = vshrl.u32 %v279, 7
        %v281 = vsub.s32 3, %v280
        %v282 = vrot.slane %v154, %v281
        %284 = vbcast.lane.b32.xlu0 %v282, 256
        %v285 = vpop.permute.xlu0 %284
        %s287 = sor.u32 256, 8
        %288 = vbcast.lane.b32.xlu0 %v282, %s287
        %v289 = vpop.permute.xlu0 %288
        %v290 = vlaneseq
        %v291 = vshrl.u32 %v290, 7
        %v292 = vsub.s32 4, %v291
        %v293 = vrot.slane %v154, %v292
        %295 = vbcast.lane.b32.xlu0 %v293, 256
        %v296 = vpop.permute.xlu0 %295
        %s298 = sor.u32 256, 8
        %299 = vbcast.lane.b32.xlu0 %v293, %s298
        %v300 = vpop.permute.xlu0 %299
        %v301 = vlaneseq
        %v302 = vshrl.u32 %v301, 7
        %v303 = vsub.s32 5, %v302
        %v304 = vrot.slane %v154, %v303
        %306 = vbcast.lane.b32.xlu0 %v304, 256
        %v307 = vpop.permute.xlu0 %306
        %s309 = sor.u32 256, 8
        %310 = vbcast.lane.b32.xlu0 %v304, %s309
        %v311 = vpop.permute.xlu0 %310
        %v312 = vlaneseq
        %v313 = vshrl.u32 %v312, 7
        %v314 = vsub.s32 6, %v313
        %v315 = vrot.slane %v154, %v314
        %317 = vbcast.lane.b32.xlu0 %v315, 256
        %v318 = vpop.permute.xlu0 %317
        %s320 = sor.u32 256, 8
        %321 = vbcast.lane.b32.xlu0 %v315, %s320
        %v322 = vpop.permute.xlu0 %321
        %v323 = vlaneseq
        %v324 = vshrl.u32 %v323, 7
        %v325 = vsub.s32 7, %v324
        %v326 = vrot.slane %v154, %v325
        %328 = vbcast.lane.b32.xlu0 %v326, 256
        %v329 = vpop.permute.xlu0 %328
        %s331 = sor.u32 256, 8
        %332 = vbcast.lane.b32.xlu0 %v326, %s331
        %v333 = vpop.permute.xlu0 %332
        %v334 = vlaneseq
        %v335 = vshrl.u32 %v334, 7
        %v336 = vsub.s32 0, %v335
        %v337 = vrot.slane %v156, %v336
        %339 = vbcast.lane.b32.xlu0 %v337, 256
        %v340 = vpop.permute.xlu0 %339
        %s342 = sor.u32 256, 8
        %343 = vbcast.lane.b32.xlu0 %v337, %s342
        %v344 = vpop.permute.xlu0 %343
        %v345 = vlaneseq
        %v346 = vshrl.u32 %v345, 7
        %v347 = vsub.s32 1, %v346
        %v348 = vrot.slane %v156, %v347
        %350 = vbcast.lane.b32.xlu0 %v348, 256
        %v351 = vpop.permute.xlu0 %350
        %s353 = sor.u32 256, 8
        %354 = vbcast.lane.b32.xlu0 %v348, %s353
        %v355 = vpop.permute.xlu0 %354
        %v356 = vlaneseq
        %v357 = vshrl.u32 %v356, 7
        %v358 = vsub.s32 2, %v357
        %v359 = vrot.slane %v156, %v358
        %361 = vbcast.lane.b32.xlu0 %v359, 256
        %v362 = vpop.permute.xlu0 %361
        %s364 = sor.u32 256, 8
        %365 = vbcast.lane.b32.xlu0 %v359, %s364
        %v366 = vpop.permute.xlu0 %365
        %v367 = vlaneseq
        %v368 = vshrl.u32 %v367, 7
        %v369 = vsub.s32 3, %v368
        %v370 = vrot.slane %v156, %v369
        %372 = vbcast.lane.b32.xlu0 %v370, 256
        %v373 = vpop.permute.xlu0 %372
        %s375 = sor.u32 256, 8
        %376 = vbcast.lane.b32.xlu0 %v370, %s375
        %v377 = vpop.permute.xlu0 %376
        %v378 = vlaneseq
        %v379 = vshrl.u32 %v378, 7
        %v380 = vsub.s32 4, %v379
        %v381 = vrot.slane %v156, %v380
        %383 = vbcast.lane.b32.xlu0 %v381, 256
        %v384 = vpop.permute.xlu0 %383
        %s386 = sor.u32 256, 8
        %387 = vbcast.lane.b32.xlu0 %v381, %s386
        %v388 = vpop.permute.xlu0 %387
        %v389 = vlaneseq
        %v390 = vshrl.u32 %v389, 7
        %v391 = vsub.s32 5, %v390
        %v392 = vrot.slane %v156, %v391
        %394 = vbcast.lane.b32.xlu0 %v392, 256
        %v395 = vpop.permute.xlu0 %394
        %s397 = sor.u32 256, 8
        %398 = vbcast.lane.b32.xlu0 %v392, %s397
        %v399 = vpop.permute.xlu0 %398
        %v400 = vlaneseq
        %v401 = vshrl.u32 %v400, 7
        %v402 = vsub.s32 6, %v401
        %v403 = vrot.slane %v156, %v402
        %405 = vbcast.lane.b32.xlu0 %v403, 256
        %v406 = vpop.permute.xlu0 %405
        %s408 = sor.u32 256, 8
        %409 = vbcast.lane.b32.xlu0 %v403, %s408
        %v410 = vpop.permute.xlu0 %409
        %v411 = vlaneseq
        %v412 = vshrl.u32 %v411, 7
        %v413 = vsub.s32 7, %v412
        %v414 = vrot.slane %v156, %v413
        %416 = vbcast.lane.b32.xlu0 %v414, 256
        %v417 = vpop.permute.xlu0 %416
        %s419 = sor.u32 256, 8
        %420 = vbcast.lane.b32.xlu0 %v414, %s419
        %v421 = vpop.permute.xlu0 %420
        %v422 = vlaneseq
        %v423 = vshrl.u32 %v422, 7
        %v424 = vsub.s32 0, %v423
        %v425 = vrot.slane %v157, %v424
        %427 = vbcast.lane.b32.xlu0 %v425, 256
        %v428 = vpop.permute.xlu0 %427
        %s430 = sor.u32 256, 8
        %431 = vbcast.lane.b32.xlu0 %v425, %s430
        %v432 = vpop.permute.xlu0 %431
        %v433 = vlaneseq
        %v434 = vshrl.u32 %v433, 7
        %v435 = vsub.s32 1, %v434
        %v436 = vrot.slane %v157, %v435
        %438 = vbcast.lane.b32.xlu0 %v436, 256
        %v439 = vpop.permute.xlu0 %438
        %s441 = sor.u32 256, 8
        %442 = vbcast.lane.b32.xlu0 %v436, %s441
        %v443 = vpop.permute.xlu0 %442
        %v444 = vlaneseq
        %v445 = vshrl.u32 %v444, 7
        %v446 = vsub.s32 2, %v445
        %v447 = vrot.slane %v157, %v446
        %449 = vbcast.lane.b32.xlu0 %v447, 256
        %v450 = vpop.permute.xlu0 %449
        %s452 = sor.u32 256, 8
        %453 = vbcast.lane.b32.xlu0 %v447, %s452
        %v454 = vpop.permute.xlu0 %453
        %v455 = vlaneseq
        %v456 = vshrl.u32 %v455, 7
        %v457 = vsub.s32 3, %v456
        %v458 = vrot.slane %v157, %v457
        %460 = vbcast.lane.b32.xlu0 %v458, 256
        %v461 = vpop.permute.xlu0 %460
        %s463 = sor.u32 256, 8
        %464 = vbcast.lane.b32.xlu0 %v458, %s463
        %v465 = vpop.permute.xlu0 %464
        %v466 = vlaneseq
        %v467 = vshrl.u32 %v466, 7
        %v468 = vsub.s32 4, %v467
        %v469 = vrot.slane %v157, %v468
        %471 = vbcast.lane.b32.xlu0 %v469, 256
        %v472 = vpop.permute.xlu0 %471
        %s474 = sor.u32 256, 8
        %475 = vbcast.lane.b32.xlu0 %v469, %s474
        %v476 = vpop.permute.xlu0 %475
        %v477 = vlaneseq
        %v478 = vshrl.u32 %v477, 7
        %v479 = vsub.s32 5, %v478
        %v480 = vrot.slane %v157, %v479
        %482 = vbcast.lane.b32.xlu0 %v480, 256
        %v483 = vpop.permute.xlu0 %482
        %s485 = sor.u32 256, 8
        %486 = vbcast.lane.b32.xlu0 %v480, %s485
        %v487 = vpop.permute.xlu0 %486
        %v488 = vlaneseq
        %v489 = vshrl.u32 %v488, 7
        %v490 = vsub.s32 6, %v489
        %v491 = vrot.slane %v157, %v490
        %493 = vbcast.lane.b32.xlu0 %v491, 256
        %v494 = vpop.permute.xlu0 %493
        %s496 = sor.u32 256, 8
        %497 = vbcast.lane.b32.xlu0 %v491, %s496
        %v498 = vpop.permute.xlu0 %497
        %v499 = vlaneseq
        %v500 = vshrl.u32 %v499, 7
        %v501 = vsub.s32 7, %v500
        %v502 = vrot.slane %v157, %v501
        %504 = vbcast.lane.b32.xlu0 %v502, 256
        %v505 = vpop.permute.xlu0 %504
        %s507 = sor.u32 256, 8
        %508 = vbcast.lane.b32.xlu0 %v502, %s507
        %v509 = vpop.permute.xlu0 %508
        %vm510 = vcmask 7168
        %v511 = vsel %vm510, %v164, %v340
        %v512 = vsel %vm510, %v168, %v344
        %v513 = vsel %vm510, %v175, %v351
        %v514 = vsel %vm510, %v179, %v355
        %v515 = vsel %vm510, %v186, %v362
        %v516 = vsel %vm510, %v190, %v366
        %v517 = vsel %vm510, %v197, %v373
        %v518 = vsel %vm510, %v201, %v377
        %v519 = vsel %vm510, %v208, %v384
        %v520 = vsel %vm510, %v212, %v388
        %v521 = vsel %vm510, %v219, %v395
        %v522 = vsel %vm510, %v223, %v399
        %v523 = vsel %vm510, %v230, %v406
        %v524 = vsel %vm510, %v234, %v410
        %v525 = vsel %vm510, %v241, %v417
        %v526 = vsel %vm510, %v245, %v421
        %v527 = vsel %vm510, %v252, %v428
        %v528 = vsel %vm510, %v256, %v432
        %v529 = vsel %vm510, %v263, %v439
        %v530 = vsel %vm510, %v267, %v443
        %v531 = vsel %vm510, %v274, %v450
        %v532 = vsel %vm510, %v278, %v454
        %v533 = vsel %vm510, %v285, %v461
        %v534 = vsel %vm510, %v289, %v465
        %v535 = vsel %vm510, %v296, %v472
        %v536 = vsel %vm510, %v300, %v476
        %v537 = vsel %vm510, %v307, %v483
        %v538 = vsel %vm510, %v311, %v487
        %v539 = vsel %vm510, %v318, %v494
        %v540 = vsel %vm510, %v322, %v498
        %v541 = vsel %vm510, %v329, %v505
        %v542 = vsel %vm510, %v333, %v509
        %v543 = vcombine.low %v511, %v515
        %v544 = vcombine.high %v511, %v515
        %v546 = vunpack.c.l.s4 1983009808
        %v547 = vunpack.c.0.s8 %v546
        %v548 = vlaneseq
        %v549 = vshrl.u32 %v548, 7
        %v550 = vsub.s32 %v547, %v549
        %v551 = vrot.slane %v543, %v550
        %v553 = vunpack.c.l.s4 1983009808
        %v554 = vunpack.c.0.s8 %v553
        %v555 = vlaneseq
        %v556 = vshrl.u32 %v555, 7
        %v557 = vsub.s32 %v554, %v556
        %v558 = vrot.slane %v544, %v557
        %v559 = vcombine.low %v513, %v517
        %v560 = vcombine.high %v513, %v517
        %v562 = vunpack.c.l.s4 1983009808
        %v563 = vunpack.c.0.s8 %v562
        %v564 = vlaneseq
        %v565 = vshrl.u32 %v564, 7
        %v566 = vsub.s32 %v563, %v565
        %v567 = vrot.slane %v559, %v566
        %v569 = vunpack.c.l.s4 1983009808
        %v570 = vunpack.c.0.s8 %v569
        %v571 = vlaneseq
        %v572 = vshrl.u32 %v571, 7
        %v573 = vsub.s32 %v570, %v572
        %v574 = vrot.slane %v560, %v573
        %v575 = vcombine.low %v519, %v523
        %v576 = vcombine.high %v519, %v523
        %v578 = vunpack.c.l.s4 1983009808
        %v579 = vunpack.c.0.s8 %v578
        %v580 = vlaneseq
        %v581 = vshrl.u32 %v580, 7
        %v582 = vsub.s32 %v579, %v581
        %v583 = vrot.slane %v575, %v582
        %v585 = vunpack.c.l.s4 1983009808
        %v586 = vunpack.c.0.s8 %v585
        %v587 = vlaneseq
        %v588 = vshrl.u32 %v587, 7
        %v589 = vsub.s32 %v586, %v588
        %v590 = vrot.slane %v576, %v589
        %v591 = vcombine.low %v521, %v525
        %v592 = vcombine.high %v521, %v525
        %v594 = vunpack.c.l.s4 1983009808
        %v595 = vunpack.c.0.s8 %v594
        %v596 = vlaneseq
        %v597 = vshrl.u32 %v596, 7
        %v598 = vsub.s32 %v595, %v597
        %v599 = vrot.slane %v591, %v598
        %v601 = vunpack.c.l.s4 1983009808
        %v602 = vunpack.c.0.s8 %v601
        %v603 = vlaneseq
        %v604 = vshrl.u32 %v603, 7
        %v605 = vsub.s32 %v602, %v604
        %v606 = vrot.slane %v592, %v605
        %v607 = vcombine.low %v551, %v567
        %v608 = vcombine.high %v551, %v567
        %v610 = vunpack.c.l.s4 1934713408
        %v611 = vunpack.c.0.s8 %v610
        %v612 = vlaneseq
        %v613 = vshrl.u32 %v612, 7
        %v614 = vsub.s32 %v611, %v613
        %v615 = vrot.slane %v607, %v614
        %v617 = vunpack.c.l.s4 1934713408
        %v618 = vunpack.c.0.s8 %v617
        %v619 = vlaneseq
        %v620 = vshrl.u32 %v619, 7
        %v621 = vsub.s32 %v618, %v620
        %v622 = vrot.slane %v608, %v621
        %v623 = vcombine.low %v558, %v574
        %v624 = vcombine.high %v558, %v574
        %v626 = vunpack.c.l.s4 1934713408
        %v627 = vunpack.c.0.s8 %v626
        %v628 = vlaneseq
        %v629 = vshrl.u32 %v628, 7
        %v630 = vsub.s32 %v627, %v629
        %v631 = vrot.slane %v623, %v630
        %v633 = vunpack.c.l.s4 1934713408
        %v634 = vunpack.c.0.s8 %v633
        %v635 = vlaneseq
        %v636 = vshrl.u32 %v635, 7
        %v637 = vsub.s32 %v634, %v636
        %v638 = vrot.slane %v624, %v637
        %v639 = vcombine.low %v583, %v599
        %v640 = vcombine.high %v583, %v599
        %v642 = vunpack.c.l.s4 1934713408
        %v643 = vunpack.c.0.s8 %v642
        %v644 = vlaneseq
        %v645 = vshrl.u32 %v644, 7
        %v646 = vsub.s32 %v643, %v645
        %v647 = vrot.slane %v639, %v646
        %v649 = vunpack.c.l.s4 1934713408
        %v650 = vunpack.c.0.s8 %v649
        %v651 = vlaneseq
        %v652 = vshrl.u32 %v651, 7
        %v653 = vsub.s32 %v650, %v652
        %v654 = vrot.slane %v640, %v653
        %v655 = vcombine.low %v590, %v606
        %v656 = vcombine.high %v590, %v606
        %v658 = vunpack.c.l.s4 1934713408
        %v659 = vunpack.c.0.s8 %v658
        %v660 = vlaneseq
        %v661 = vshrl.u32 %v660, 7
        %v662 = vsub.s32 %v659, %v661
        %v663 = vrot.slane %v655, %v662
        %v665 = vunpack.c.l.s4 1934713408
        %v666 = vunpack.c.0.s8 %v665
        %v667 = vlaneseq
        %v668 = vshrl.u32 %v667, 7
        %v669 = vsub.s32 %v666, %v668
        %v670 = vrot.slane %v656, %v669
        %v671 = vcombine.low %v615, %v647
        %v672 = vcombine.high %v615, %v647
        %v673 = vcombine.low %v622, %v654
        %v674 = vcombine.high %v622, %v654
        %v675 = vcombine.low %v631, %v663
        %v676 = vcombine.high %v631, %v663
        %v677 = vcombine.low %v638, %v670
        %v678 = vcombine.high %v638, %v670
        %v679 = vcombine.low %v527, %v531
        %v680 = vcombine.high %v527, %v531
        %v682 = vunpack.c.l.s4 1983009808
        %v683 = vunpack.c.0.s8 %v682
        %v684 = vlaneseq
        %v685 = vshrl.u32 %v684, 7
        %v686 = vsub.s32 %v683, %v685
        %v687 = vrot.slane %v679, %v686
        %v689 = vunpack.c.l.s4 1983009808
        %v690 = vunpack.c.0.s8 %v689
        %v691 = vlaneseq
        %v692 = vshrl.u32 %v691, 7
        %v693 = vsub.s32 %v690, %v692
        %v694 = vrot.slane %v680, %v693
        %v695 = vcombine.low %v529, %v533
        %v696 = vcombine.high %v529, %v533
        %v698 = vunpack.c.l.s4 1983009808
        %v699 = vunpack.c.0.s8 %v698
        %v700 = vlaneseq
        %v701 = vshrl.u32 %v700, 7
        %v702 = vsub.s32 %v699, %v701
        %v703 = vrot.slane %v695, %v702
        %v705 = vunpack.c.l.s4 1983009808
        %v706 = vunpack.c.0.s8 %v705
        %v707 = vlaneseq
        %v708 = vshrl.u32 %v707, 7
        %v709 = vsub.s32 %v706, %v708
        %v710 = vrot.slane %v696, %v709
        %v711 = vcombine.low %v535, %v539
        %v712 = vcombine.high %v535, %v539
        %v714 = vunpack.c.l.s4 1983009808
        %v715 = vunpack.c.0.s8 %v714
        %v716 = vlaneseq
        %v717 = vshrl.u32 %v716, 7
        %v718 = vsub.s32 %v715, %v717
        %v719 = vrot.slane %v711, %v718
        %v721 = vunpack.c.l.s4 1983009808
        %v722 = vunpack.c.0.s8 %v721
        %v723 = vlaneseq
        %v724 = vshrl.u32 %v723, 7
        %v725 = vsub.s32 %v722, %v724
        %v726 = vrot.slane %v712, %v725
        %v727 = vcombine.low %v537, %v541
        %v728 = vcombine.high %v537, %v541
        %v730 = vunpack.c.l.s4 1983009808
        %v731 = vunpack.c.0.s8 %v730
        %v732 = vlaneseq
        %v733 = vshrl.u32 %v732, 7
        %v734 = vsub.s32 %v731, %v733
        %v735 = vrot.slane %v727, %v734
        %v737 = vunpack.c.l.s4 1983009808
        %v738 = vunpack.c.0.s8 %v737
        %v739 = vlaneseq
        %v740 = vshrl.u32 %v739, 7
        %v741 = vsub.s32 %v738, %v740
        %v742 = vrot.slane %v728, %v741
        %v743 = vcombine.low %v687, %v703
        %v744 = vcombine.high %v687, %v703
        %v746 = vunpack.c.l.s4 1934713408
        %v747 = vunpack.c.0.s8 %v746
        %v748 = vlaneseq
        %v749 = vshrl.u32 %v748, 7
        %v750 = vsub.s32 %v747, %v749
        %v751 = vrot.slane %v743, %v750
        %v753 = vunpack.c.l.s4 1934713408
        %v754 = vunpack.c.0.s8 %v753
        %v755 = vlaneseq
        %v756 = vshrl.u32 %v755, 7
        %v757 = vsub.s32 %v754, %v756
        %v758 = vrot.slane %v744, %v757
        %v759 = vcombine.low %v694, %v710
        %v760 = vcombine.high %v694, %v710
        %v762 = vunpack.c.l.s4 1934713408
        %v763 = vunpack.c.0.s8 %v762
        %v764 = vlaneseq
        %v765 = vshrl.u32 %v764, 7
        %v766 = vsub.s32 %v763, %v765
        %v767 = vrot.slane %v759, %v766
        %v769 = vunpack.c.l.s4 1934713408
        %v770 = vunpack.c.0.s8 %v769
        %v771 = vlaneseq
        %v772 = vshrl.u32 %v771, 7
        %v773 = vsub.s32 %v770, %v772
        %v774 = vrot.slane %v760, %v773
        %v775 = vcombine.low %v719, %v735
        %v776 = vcombine.high %v719, %v735
        %v778 = vunpack.c.l.s4 1934713408
        %v779 = vunpack.c.0.s8 %v778
        %v780 = vlaneseq
        %v781 = vshrl.u32 %v780, 7
        %v782 = vsub.s32 %v779, %v781
        %v783 = vrot.slane %v775, %v782
        %v785 = vunpack.c.l.s4 1934713408
        %v786 = vunpack.c.0.s8 %v785
        %v787 = vlaneseq
        %v788 = vshrl.u32 %v787, 7
        %v789 = vsub.s32 %v786, %v788
        %v790 = vrot.slane %v776, %v789
        %v791 = vcombine.low %v726, %v742
        %v792 = vcombine.high %v726, %v742
        %v794 = vunpack.c.l.s4 1934713408
        %v795 = vunpack.c.0.s8 %v794
        %v796 = vlaneseq
        %v797 = vshrl.u32 %v796, 7
        %v798 = vsub.s32 %v795, %v797
        %v799 = vrot.slane %v791, %v798
        %v801 = vunpack.c.l.s4 1934713408
        %v802 = vunpack.c.0.s8 %v801
        %v803 = vlaneseq
        %v804 = vshrl.u32 %v803, 7
        %v805 = vsub.s32 %v802, %v804
        %v806 = vrot.slane %v792, %v805
        %v807 = vcombine.low %v751, %v783
        %v808 = vcombine.high %v751, %v783
        %v809 = vcombine.low %v758, %v790
        %v810 = vcombine.high %v758, %v790
        %v811 = vcombine.low %v767, %v799
        %v812 = vcombine.high %v767, %v799
        %v813 = vcombine.low %v774, %v806
        %v814 = vcombine.high %v774, %v806
        %v815 = vcombine.low %v512, %v516
        %v816 = vcombine.high %v512, %v516
        %v818 = vunpack.c.l.s4 1983009808
        %v819 = vunpack.c.0.s8 %v818
        %v820 = vlaneseq
        %v821 = vshrl.u32 %v820, 7
        %v822 = vsub.s32 %v819, %v821
        %v823 = vrot.slane %v815, %v822
        %v825 = vunpack.c.l.s4 1983009808
        %v826 = vunpack.c.0.s8 %v825
        %v827 = vlaneseq
        %v828 = vshrl.u32 %v827, 7
        %v829 = vsub.s32 %v826, %v828
        %v830 = vrot.slane %v816, %v829
        %v831 = vcombine.low %v514, %v518
        %v832 = vcombine.high %v514, %v518
        %v834 = vunpack.c.l.s4 1983009808
        %v835 = vunpack.c.0.s8 %v834
        %v836 = vlaneseq
        %v837 = vshrl.u32 %v836, 7
        %v838 = vsub.s32 %v835, %v837
        %v839 = vrot.slane %v831, %v838
        %v841 = vunpack.c.l.s4 1983009808
        %v842 = vunpack.c.0.s8 %v841
        %v843 = vlaneseq
        %v844 = vshrl.u32 %v843, 7
        %v845 = vsub.s32 %v842, %v844
        %v846 = vrot.slane %v832, %v845
        %v847 = vcombine.low %v520, %v524
        %v848 = vcombine.high %v520, %v524
        %v850 = vunpack.c.l.s4 1983009808
        %v851 = vunpack.c.0.s8 %v850
        %v852 = vlaneseq
        %v853 = vshrl.u32 %v852, 7
        %v854 = vsub.s32 %v851, %v853
        %v855 = vrot.slane %v847, %v854
        %v857 = vunpack.c.l.s4 1983009808
        %v858 = vunpack.c.0.s8 %v857
        %v859 = vlaneseq
        %v860 = vshrl.u32 %v859, 7
        %v861 = vsub.s32 %v858, %v860
        %v862 = vrot.slane %v848, %v861
        %v863 = vcombine.low %v522, %v526
        %v864 = vcombine.high %v522, %v526
        %v866 = vunpack.c.l.s4 1983009808
        %v867 = vunpack.c.0.s8 %v866
        %v868 = vlaneseq
        %v869 = vshrl.u32 %v868, 7
        %v870 = vsub.s32 %v867, %v869
        %v871 = vrot.slane %v863, %v870
        %v873 = vunpack.c.l.s4 1983009808
        %v874 = vunpack.c.0.s8 %v873
        %v875 = vlaneseq
        %v876 = vshrl.u32 %v875, 7
        %v877 = vsub.s32 %v874, %v876
        %v878 = vrot.slane %v864, %v877
        %v879 = vcombine.low %v823, %v839
        %v880 = vcombine.high %v823, %v839
        %v882 = vunpack.c.l.s4 1934713408
        %v883 = vunpack.c.0.s8 %v882
        %v884 = vlaneseq
        %v885 = vshrl.u32 %v884, 7
        %v886 = vsub.s32 %v883, %v885
        %v887 = vrot.slane %v879, %v886
        %v889 = vunpack.c.l.s4 1934713408
        %v890 = vunpack.c.0.s8 %v889
        %v891 = vlaneseq
        %v892 = vshrl.u32 %v891, 7
        %v893 = vsub.s32 %v890, %v892
        %v894 = vrot.slane %v880, %v893
        %v895 = vcombine.low %v830, %v846
        %v896 = vcombine.high %v830, %v846
        %v898 = vunpack.c.l.s4 1934713408
        %v899 = vunpack.c.0.s8 %v898
        %v900 = vlaneseq
        %v901 = vshrl.u32 %v900, 7
        %v902 = vsub.s32 %v899, %v901
        %v903 = vrot.slane %v895, %v902
        %v905 = vunpack.c.l.s4 1934713408
        %v906 = vunpack.c.0.s8 %v905
        %v907 = vlaneseq
        %v908 = vshrl.u32 %v907, 7
        %v909 = vsub.s32 %v906, %v908
        %v910 = vrot.slane %v896, %v909
        %v911 = vcombine.low %v855, %v871
        %v912 = vcombine.high %v855, %v871
        %v914 = vunpack.c.l.s4 1934713408
        %v915 = vunpack.c.0.s8 %v914
        %v916 = vlaneseq
        %v917 = vshrl.u32 %v916, 7
        %v918 = vsub.s32 %v915, %v917
        %v919 = vrot.slane %v911, %v918
        %v921 = vunpack.c.l.s4 1934713408
        %v922 = vunpack.c.0.s8 %v921
        %v923 = vlaneseq
        %v924 = vshrl.u32 %v923, 7
        %v925 = vsub.s32 %v922, %v924
        %v926 = vrot.slane %v912, %v925
        %v927 = vcombine.low %v862, %v878
        %v928 = vcombine.high %v862, %v878
        %v930 = vunpack.c.l.s4 1934713408
        %v931 = vunpack.c.0.s8 %v930
        %v932 = vlaneseq
        %v933 = vshrl.u32 %v932, 7
        %v934 = vsub.s32 %v931, %v933
        %v935 = vrot.slane %v927, %v934
        %v937 = vunpack.c.l.s4 1934713408
        %v938 = vunpack.c.0.s8 %v937
        %v939 = vlaneseq
        %v940 = vshrl.u32 %v939, 7
        %v941 = vsub.s32 %v938, %v940
        %v942 = vrot.slane %v928, %v941
        %v943 = vcombine.low %v887, %v919
        %v944 = vcombine.high %v887, %v919
        %v945 = vcombine.low %v894, %v926
        %v946 = vcombine.high %v894, %v926
        %v947 = vcombine.low %v903, %v935
        %v948 = vcombine.high %v903, %v935
        %v949 = vcombine.low %v910, %v942
        %v950 = vcombine.high %v910, %v942
        %v951 = vcombine.low %v528, %v532
        %v952 = vcombine.high %v528, %v532
        %v954 = vunpack.c.l.s4 1983009808
        %v955 = vunpack.c.0.s8 %v954
        %v956 = vlaneseq
        %v957 = vshrl.u32 %v956, 7
        %v958 = vsub.s32 %v955, %v957
        %v959 = vrot.slane %v951, %v958
        %v961 = vunpack.c.l.s4 1983009808
        %v962 = vunpack.c.0.s8 %v961
        %v963 = vlaneseq
        %v964 = vshrl.u32 %v963, 7
        %v965 = vsub.s32 %v962, %v964
        %v966 = vrot.slane %v952, %v965
        %v967 = vcombine.low %v530, %v534
        %v968 = vcombine.high %v530, %v534
        %v970 = vunpack.c.l.s4 1983009808
        %v971 = vunpack.c.0.s8 %v970
        %v972 = vlaneseq
        %v973 = vshrl.u32 %v972, 7
        %v974 = vsub.s32 %v971, %v973
        %v975 = vrot.slane %v967, %v974
        %v977 = vunpack.c.l.s4 1983009808
        %v978 = vunpack.c.0.s8 %v977
        %v979 = vlaneseq
        %v980 = vshrl.u32 %v979, 7
        %v981 = vsub.s32 %v978, %v980
        %v982 = vrot.slane %v968, %v981
        %v983 = vcombine.low %v536, %v540
        %v984 = vcombine.high %v536, %v540
        %v986 = vunpack.c.l.s4 1983009808
        %v987 = vunpack.c.0.s8 %v986
        %v988 = vlaneseq
        %v989 = vshrl.u32 %v988, 7
        %v990 = vsub.s32 %v987, %v989
        %v991 = vrot.slane %v983, %v990
        %v993 = vunpack.c.l.s4 1983009808
        %v994 = vunpack.c.0.s8 %v993
        %v995 = vlaneseq
        %v996 = vshrl.u32 %v995, 7
        %v997 = vsub.s32 %v994, %v996
        %v998 = vrot.slane %v984, %v997
        %v999 = vcombine.low %v538, %v542
        %v1000 = vcombine.high %v538, %v542
        %v1002 = vunpack.c.l.s4 1983009808
        %v1003 = vunpack.c.0.s8 %v1002
        %v1004 = vlaneseq
        %v1005 = vshrl.u32 %v1004, 7
        %v1006 = vsub.s32 %v1003, %v1005
        %v1007 = vrot.slane %v999, %v1006
        %v1009 = vunpack.c.l.s4 1983009808
        %v1010 = vunpack.c.0.s8 %v1009
        %v1011 = vlaneseq
        %v1012 = vshrl.u32 %v1011, 7
        %v1013 = vsub.s32 %v1010, %v1012
        %v1014 = vrot.slane %v1000, %v1013
        %v1015 = vcombine.low %v959, %v975
        %v1016 = vcombine.high %v959, %v975
        %v1018 = vunpack.c.l.s4 1934713408
        %v1019 = vunpack.c.0.s8 %v1018
        %v1020 = vlaneseq
        %v1021 = vshrl.u32 %v1020, 7
        %v1022 = vsub.s32 %v1019, %v1021
        %v1023 = vrot.slane %v1015, %v1022
        %v1025 = vunpack.c.l.s4 1934713408
        %v1026 = vunpack.c.0.s8 %v1025
        %v1027 = vlaneseq
        %v1028 = vshrl.u32 %v1027, 7
        %v1029 = vsub.s32 %v1026, %v1028
        %v1030 = vrot.slane %v1016, %v1029
        %v1031 = vcombine.low %v966, %v982
        %v1032 = vcombine.high %v966, %v982
        %v1034 = vunpack.c.l.s4 1934713408
        %v1035 = vunpack.c.0.s8 %v1034
        %v1036 = vlaneseq
        %v1037 = vshrl.u32 %v1036, 7
        %v1038 = vsub.s32 %v1035, %v1037
        %v1039 = vrot.slane %v1031, %v1038
        %v1041 = vunpack.c.l.s4 1934713408
        %v1042 = vunpack.c.0.s8 %v1041
        %v1043 = vlaneseq
        %v1044 = vshrl.u32 %v1043, 7
        %v1045 = vsub.s32 %v1042, %v1044
        %v1046 = vrot.slane %v1032, %v1045
        %v1047 = vcombine.low %v991, %v1007
        %v1048 = vcombine.high %v991, %v1007
        %v1050 = vunpack.c.l.s4 1934713408
        %v1051 = vunpack.c.0.s8 %v1050
        %v1052 = vlaneseq
        %v1053 = vshrl.u32 %v1052, 7
        %v1054 = vsub.s32 %v1051, %v1053
        %v1055 = vrot.slane %v1047, %v1054
        %v1057 = vunpack.c.l.s4 1934713408
        %v1058 = vunpack.c.0.s8 %v1057
        %v1059 = vlaneseq
        %v1060 = vshrl.u32 %v1059, 7
        %v1061 = vsub.s32 %v1058, %v1060
        %v1062 = vrot.slane %v1048, %v1061
        %v1063 = vcombine.low %v998, %v1014
        %v1064 = vcombine.high %v998, %v1014
        %v1066 = vunpack.c.l.s4 1934713408
        %v1067 = vunpack.c.0.s8 %v1066
        %v1068 = vlaneseq
        %v1069 = vshrl.u32 %v1068, 7
        %v1070 = vsub.s32 %v1067, %v1069
        %v1071 = vrot.slane %v1063, %v1070
        %v1073 = vunpack.c.l.s4 1934713408
        %v1074 = vunpack.c.0.s8 %v1073
        %v1075 = vlaneseq
        %v1076 = vshrl.u32 %v1075, 7
        %v1077 = vsub.s32 %v1074, %v1076
        %v1078 = vrot.slane %v1064, %v1077
        %v1079 = vcombine.low %v1023, %v1055
        %v1080 = vcombine.high %v1023, %v1055
        %v1081 = vcombine.low %v1030, %v1062
        %v1082 = vcombine.high %v1030, %v1062
        %v1083 = vcombine.low %v1039, %v1071
        %v1084 = vcombine.high %v1039, %v1071
        %v1085 = vcombine.low %v1046, %v1078
        %v1086 = vcombine.high %v1046, %v1078
        %1089 = vrot.lane.b32.xlu0 %v672, 2
        %v1090 = vpop.permute.xlu0 %1089
        %1091 = vrot.lane.b32.xlu0 %v808, 2
        %v1092 = vpop.permute.xlu0 %1091
        %1097 = vrot.lane.b32.xlu0 %v673, 4
        %v1098 = vpop.permute.xlu0 %1097
        %1099 = vrot.lane.b32.xlu0 %v809, 4
        %v1100 = vpop.permute.xlu0 %1099
        %1105 = vrot.lane.b32.xlu0 %v674, 6
        %v1106 = vpop.permute.xlu0 %1105
        %1107 = vrot.lane.b32.xlu0 %v810, 6
        %v1108 = vpop.permute.xlu0 %1107
        %1113 = vrot.lane.b32.xlu0 %v675, 8
        %v1114 = vpop.permute.xlu0 %1113
        %1115 = vrot.lane.b32.xlu0 %v811, 8
        %v1116 = vpop.permute.xlu0 %1115
        %1121 = vrot.lane.b32.xlu0 %v676, 10
        %v1122 = vpop.permute.xlu0 %1121
        %1123 = vrot.lane.b32.xlu0 %v812, 10
        %v1124 = vpop.permute.xlu0 %1123
        %1129 = vrot.lane.b32.xlu0 %v677, 12
        %v1130 = vpop.permute.xlu0 %1129
        %1131 = vrot.lane.b32.xlu0 %v813, 12
        %v1132 = vpop.permute.xlu0 %1131
        %1137 = vrot.lane.b32.xlu0 %v678, 14
        %v1138 = vpop.permute.xlu0 %1137
        %1139 = vrot.lane.b32.xlu0 %v814, 14
        %v1140 = vpop.permute.xlu0 %1139
        %1145 = vrot.lane.b32.xlu0 %v943, 16
        %v1146 = vpop.permute.xlu0 %1145
        %1147 = vrot.lane.b32.xlu0 %v1079, 16
        %v1148 = vpop.permute.xlu0 %1147
        %1153 = vrot.lane.b32.xlu0 %v944, 18
        %v1154 = vpop.permute.xlu0 %1153
        %1155 = vrot.lane.b32.xlu0 %v1080, 18
        %v1156 = vpop.permute.xlu0 %1155
        %1161 = vrot.lane.b32.xlu0 %v945, 20
        %v1162 = vpop.permute.xlu0 %1161
        %1163 = vrot.lane.b32.xlu0 %v1081, 20
        %v1164 = vpop.permute.xlu0 %1163
        %1169 = vrot.lane.b32.xlu0 %v946, 22
        %v1170 = vpop.permute.xlu0 %1169
        %1171 = vrot.lane.b32.xlu0 %v1082, 22
        %v1172 = vpop.permute.xlu0 %1171
        %1177 = vrot.lane.b32.xlu0 %v947, 24
        %v1178 = vpop.permute.xlu0 %1177
        %1179 = vrot.lane.b32.xlu0 %v1083, 24
        %v1180 = vpop.permute.xlu0 %1179
        %1185 = vrot.lane.b32.xlu0 %v948, 26
        %v1186 = vpop.permute.xlu0 %1185
        %1187 = vrot.lane.b32.xlu0 %v1084, 26
        %v1188 = vpop.permute.xlu0 %1187
        %1193 = vrot.lane.b32.xlu0 %v949, 28
        %v1194 = vpop.permute.xlu0 %1193
        %1195 = vrot.lane.b32.xlu0 %v1085, 28
        %v1196 = vpop.permute.xlu0 %1195
        %1201 = vrot.lane.b32.xlu0 %v950, 30
        %v1202 = vpop.permute.xlu0 %1201
        %1203 = vrot.lane.b32.xlu0 %v1086, 30
        %v1204 = vpop.permute.xlu0 %1203
        %vm1207 = vcmask 15360
        %v1208 = vsel %vm1207, %v671, %v1090
        %v1209 = vsel %vm1207, %v807, %v1092
        %vm1210 = vcmask 31744
        %v1211 = vsel %vm1210, %v1208, %v1098
        %v1212 = vsel %vm1210, %v1209, %v1100
        %vm1213 = vcmask 48128
        %v1214 = vsel %vm1213, %v1211, %v1106
        %v1215 = vsel %vm1213, %v1212, %v1108
        %vm1216 = vcmask 64512
        %v1217 = vsel %vm1216, %v1214, %v1114
        %v1218 = vsel %vm1216, %v1215, %v1116
        %vm1219 = vcmask 80896
        %v1220 = vsel %vm1219, %v1217, %v1122
        %v1221 = vsel %vm1219, %v1218, %v1124
        %vm1222 = vcmask 97280
        %v1223 = vsel %vm1222, %v1220, %v1130
        %v1224 = vsel %vm1222, %v1221, %v1132
        %vm1225 = vcmask 113664
        %v1226 = vsel %vm1225, %v1223, %v1138
        %v1227 = vsel %vm1225, %v1224, %v1140
        %vm1228 = vcmask 130048
        %v1229 = vsel %vm1228, %v1226, %v1146
        %v1230 = vsel %vm1228, %v1227, %v1148
        %vm1231 = vcmask 146432
        %v1232 = vsel %vm1231, %v1229, %v1154
        %v1233 = vsel %vm1231, %v1230, %v1156
        %vm1234 = vcmask 162816
        %v1235 = vsel %vm1234, %v1232, %v1162
        %v1236 = vsel %vm1234, %v1233, %v1164
        %vm1237 = vcmask 179200
        %v1238 = vsel %vm1237, %v1235, %v1170
        %v1239 = vsel %vm1237, %v1236, %v1172
        %vm1240 = vcmask 195584
        %v1241 = vsel %vm1240, %v1238, %v1178
        %v1242 = vsel %vm1240, %v1239, %v1180
        %vm1243 = vcmask 211968
        %v1244 = vsel %vm1243, %v1241, %v1186
        %v1245 = vsel %vm1243, %v1242, %v1188
        %vm1246 = vcmask 228352
        %v1247 = vsel %vm1246, %v1244, %v1194
        %v1248 = vsel %vm1246, %v1245, %v1196
        %vm1249 = vcmask 244736
        %v1250 = vsel %vm1249, %v1247, %v1202
        %v1251 = vsel %vm1249, %v1248, %v1204
        %s1252 = scalar_lea.vmem %s134, 32 [#allocation2]
        %v1253 = vld [vmem:[%s1252] sm:$0xff]
        %v1254 = vld [vmem:[%s1252 + $0x8] sm:$0xff]
        %s1255 = scalar_lea.vmem %s134, 48 [#allocation2]
        %v1256 = vld [vmem:[%s1255] sm:$0xff]
        %v1257 = vld [vmem:[%s1255 + $0x8] sm:$0xff]
        %v1258 = vlaneseq
        %v1259 = vshrl.u32 %v1258, 7
        %v1260 = vsub.s32 0, %v1259
        %v1261 = vrot.slane %v1253, %v1260
        %1263 = vbcast.lane.b32.xlu0 %v1261, 256
        %v1264 = vpop.permute.xlu0 %1263
        %s1266 = sor.u32 256, 8
        %1267 = vbcast.lane.b32.xlu0 %v1261, %s1266
        %v1268 = vpop.permute.xlu0 %1267
        %v1269 = vlaneseq
        %v1270 = vshrl.u32 %v1269, 7
        %v1271 = vsub.s32 1, %v1270
        %v1272 = vrot.slane %v1253, %v1271
        %1274 = vbcast.lane.b32.xlu0 %v1272, 256
        %v1275 = vpop.permute.xlu0 %1274
        %s1277 = sor.u32 256, 8
        %1278 = vbcast.lane.b32.xlu0 %v1272, %s1277
        %v1279 = vpop.permute.xlu0 %1278
        %v1280 = vlaneseq
        %v1281 = vshrl.u32 %v1280, 7
        %v1282 = vsub.s32 2, %v1281
        %v1283 = vrot.slane %v1253, %v1282
        %1285 = vbcast.lane.b32.xlu0 %v1283, 256
        %v1286 = vpop.permute.xlu0 %1285
        %s1288 = sor.u32 256, 8
        %1289 = vbcast.lane.b32.xlu0 %v1283, %s1288
        %v1290 = vpop.permute.xlu0 %1289
        %v1291 = vlaneseq
        %v1292 = vshrl.u32 %v1291, 7
        %v1293 = vsub.s32 3, %v1292
        %v1294 = vrot.slane %v1253, %v1293
        %1296 = vbcast.lane.b32.xlu0 %v1294, 256
        %v1297 = vpop.permute.xlu0 %1296
        %s1299 = sor.u32 256, 8
        %1300 = vbcast.lane.b32.xlu0 %v1294, %s1299
        %v1301 = vpop.permute.xlu0 %1300
        %v1302 = vlaneseq
        %v1303 = vshrl.u32 %v1302, 7
        %v1304 = vsub.s32 4, %v1303
        %v1305 = vrot.slane %v1253, %v1304
        %1307 = vbcast.lane.b32.xlu0 %v1305, 256
        %v1308 = vpop.permute.xlu0 %1307
        %s1310 = sor.u32 256, 8
        %1311 = vbcast.lane.b32.xlu0 %v1305, %s1310
        %v1312 = vpop.permute.xlu0 %1311
        %v1313 = vlaneseq
        %v1314 = vshrl.u32 %v1313, 7
        %v1315 = vsub.s32 5, %v1314
        %v1316 = vrot.slane %v1253, %v1315
        %1318 = vbcast.lane.b32.xlu0 %v1316, 256
        %v1319 = vpop.permute.xlu0 %1318
        %s1321 = sor.u32 256, 8
        %1322 = vbcast.lane.b32.xlu0 %v1316, %s1321
        %v1323 = vpop.permute.xlu0 %1322
        %v1324 = vlaneseq
        %v1325 = vshrl.u32 %v1324, 7
        %v1326 = vsub.s32 6, %v1325
        %v1327 = vrot.slane %v1253, %v1326
        %1329 = vbcast.lane.b32.xlu0 %v1327, 256
        %v1330 = vpop.permute.xlu0 %1329
        %s1332 = sor.u32 256, 8
        %1333 = vbcast.lane.b32.xlu0 %v1327, %s1332
        %v1334 = vpop.permute.xlu0 %1333
        %v1335 = vlaneseq
        %v1336 = vshrl.u32 %v1335, 7
        %v1337 = vsub.s32 7, %v1336
        %v1338 = vrot.slane %v1253, %v1337
        %1340 = vbcast.lane.b32.xlu0 %v1338, 256
        %v1341 = vpop.permute.xlu0 %1340
        %s1343 = sor.u32 256, 8
        %1344 = vbcast.lane.b32.xlu0 %v1338, %s1343
        %v1345 = vpop.permute.xlu0 %1344
        %v1346 = vlaneseq
        %v1347 = vshrl.u32 %v1346, 7
        %v1348 = vsub.s32 0, %v1347
        %v1349 = vrot.slane %v1254, %v1348
        %1351 = vbcast.lane.b32.xlu0 %v1349, 256
        %v1352 = vpop.permute.xlu0 %1351
        %s1354 = sor.u32 256, 8
        %1355 = vbcast.lane.b32.xlu0 %v1349, %s1354
        %v1356 = vpop.permute.xlu0 %1355
        %v1357 = vlaneseq
        %v1358 = vshrl.u32 %v1357, 7
        %v1359 = vsub.s32 1, %v1358
        %v1360 = vrot.slane %v1254, %v1359
        %1362 = vbcast.lane.b32.xlu0 %v1360, 256
        %v1363 = vpop.permute.xlu0 %1362
        %s1365 = sor.u32 256, 8
        %1366 = vbcast.lane.b32.xlu0 %v1360, %s1365
        %v1367 = vpop.permute.xlu0 %1366
        %v1368 = vlaneseq
        %v1369 = vshrl.u32 %v1368, 7
        %v1370 = vsub.s32 2, %v1369
        %v1371 = vrot.slane %v1254, %v1370
        %1373 = vbcast.lane.b32.xlu0 %v1371, 256
        %v1374 = vpop.permute.xlu0 %1373
        %s1376 = sor.u32 256, 8
        %1377 = vbcast.lane.b32.xlu0 %v1371, %s1376
        %v1378 = vpop.permute.xlu0 %1377
        %v1379 = vlaneseq
        %v1380 = vshrl.u32 %v1379, 7
        %v1381 = vsub.s32 3, %v1380
        %v1382 = vrot.slane %v1254, %v1381
        %1384 = vbcast.lane.b32.xlu0 %v1382, 256
        %v1385 = vpop.permute.xlu0 %1384
        %s1387 = sor.u32 256, 8
        %1388 = vbcast.lane.b32.xlu0 %v1382, %s1387
        %v1389 = vpop.permute.xlu0 %1388
        %v1390 = vlaneseq
        %v1391 = vshrl.u32 %v1390, 7
        %v1392 = vsub.s32 4, %v1391
        %v1393 = vrot.slane %v1254, %v1392
        %1395 = vbcast.lane.b32.xlu0 %v1393, 256
        %v1396 = vpop.permute.xlu0 %1395
        %s1398 = sor.u32 256, 8
        %1399 = vbcast.lane.b32.xlu0 %v1393, %s1398
        %v1400 = vpop.permute.xlu0 %1399
        %v1401 = vlaneseq
        %v1402 = vshrl.u32 %v1401, 7
        %v1403 = vsub.s32 5, %v1402
        %v1404 = vrot.slane %v1254, %v1403
        %1406 = vbcast.lane.b32.xlu0 %v1404, 256
        %v1407 = vpop.permute.xlu0 %1406
        %s1409 = sor.u32 256, 8
        %1410 = vbcast.lane.b32.xlu0 %v1404, %s1409
        %v1411 = vpop.permute.xlu0 %1410
        %v1412 = vlaneseq
        %v1413 = vshrl.u32 %v1412, 7
        %v1414 = vsub.s32 6, %v1413
        %v1415 = vrot.slane %v1254, %v1414
        %1417 = vbcast.lane.b32.xlu0 %v1415, 256
        %v1418 = vpop.permute.xlu0 %1417
        %s1420 = sor.u32 256, 8
        %1421 = vbcast.lane.b32.xlu0 %v1415, %s1420
        %v1422 = vpop.permute.xlu0 %1421
        %v1423 = vlaneseq
        %v1424 = vshrl.u32 %v1423, 7
        %v1425 = vsub.s32 7, %v1424
        %v1426 = vrot.slane %v1254, %v1425
        %1428 = vbcast.lane.b32.xlu0 %v1426, 256
        %v1429 = vpop.permute.xlu0 %1428
        %s1431 = sor.u32 256, 8
        %1432 = vbcast.lane.b32.xlu0 %v1426, %s1431
        %v1433 = vpop.permute.xlu0 %1432
        %v1434 = vlaneseq
        %v1435 = vshrl.u32 %v1434, 7
        %v1436 = vsub.s32 0, %v1435
        %v1437 = vrot.slane %v1256, %v1436
        %1439 = vbcast.lane.b32.xlu0 %v1437, 256
        %v1440 = vpop.permute.xlu0 %1439
        %s1442 = sor.u32 256, 8
        %1443 = vbcast.lane.b32.xlu0 %v1437, %s1442
        %v1444 = vpop.permute.xlu0 %1443
        %v1445 = vlaneseq
        %v1446 = vshrl.u32 %v1445, 7
        %v1447 = vsub.s32 1, %v1446
        %v1448 = vrot.slane %v1256, %v1447
        %1450 = vbcast.lane.b32.xlu0 %v1448, 256
        %v1451 = vpop.permute.xlu0 %1450
        %s1453 = sor.u32 256, 8
        %1454 = vbcast.lane.b32.xlu0 %v1448, %s1453
        %v1455 = vpop.permute.xlu0 %1454
        %v1456 = vlaneseq
        %v1457 = vshrl.u32 %v1456, 7
        %v1458 = vsub.s32 2, %v1457
        %v1459 = vrot.slane %v1256, %v1458
        %1461 = vbcast.lane.b32.xlu0 %v1459, 256
        %v1462 = vpop.permute.xlu0 %1461
        %s1464 = sor.u32 256, 8
        %1465 = vbcast.lane.b32.xlu0 %v1459, %s1464
        %v1466 = vpop.permute.xlu0 %1465
        %v1467 = vlaneseq
        %v1468 = vshrl.u32 %v1467, 7
        %v1469 = vsub.s32 3, %v1468
        %v1470 = vrot.slane %v1256, %v1469
        %1472 = vbcast.lane.b32.xlu0 %v1470, 256
        %v1473 = vpop.permute.xlu0 %1472
        %s1475 = sor.u32 256, 8
        %1476 = vbcast.lane.b32.xlu0 %v1470, %s1475
        %v1477 = vpop.permute.xlu0 %1476
        %v1478 = vlaneseq
        %v1479 = vshrl.u32 %v1478, 7
        %v1480 = vsub.s32 4, %v1479
        %v1481 = vrot.slane %v1256, %v1480
        %1483 = vbcast.lane.b32.xlu0 %v1481, 256
        %v1484 = vpop.permute.xlu0 %1483
        %s1486 = sor.u32 256, 8
        %1487 = vbcast.lane.b32.xlu0 %v1481, %s1486
        %v1488 = vpop.permute.xlu0 %1487
        %v1489 = vlaneseq
        %v1490 = vshrl.u32 %v1489, 7
        %v1491 = vsub.s32 5, %v1490
        %v1492 = vrot.slane %v1256, %v1491
        %1494 = vbcast.lane.b32.xlu0 %v1492, 256
        %v1495 = vpop.permute.xlu0 %1494
        %s1497 = sor.u32 256, 8
        %1498 = vbcast.lane.b32.xlu0 %v1492, %s1497
        %v1499 = vpop.permute.xlu0 %1498
        %v1500 = vlaneseq
        %v1501 = vshrl.u32 %v1500, 7
        %v1502 = vsub.s32 6, %v1501
        %v1503 = vrot.slane %v1256, %v1502
        %1505 = vbcast.lane.b32.xlu0 %v1503, 256
        %v1506 = vpop.permute.xlu0 %1505
        %s1508 = sor.u32 256, 8
        %1509 = vbcast.lane.b32.xlu0 %v1503, %s1508
        %v1510 = vpop.permute.xlu0 %1509
        %v1511 = vlaneseq
        %v1512 = vshrl.u32 %v1511, 7
        %v1513 = vsub.s32 7, %v1512
        %v1514 = vrot.slane %v1256, %v1513
        %1516 = vbcast.lane.b32.xlu0 %v1514, 256
        %v1517 = vpop.permute.xlu0 %1516
        %s1519 = sor.u32 256, 8
        %1520 = vbcast.lane.b32.xlu0 %v1514, %s1519
        %v1521 = vpop.permute.xlu0 %1520
        %v1522 = vlaneseq
        %v1523 = vshrl.u32 %v1522, 7
        %v1524 = vsub.s32 0, %v1523
        %v1525 = vrot.slane %v1257, %v1524
        %1527 = vbcast.lane.b32.xlu0 %v1525, 256
        %v1528 = vpop.permute.xlu0 %1527
        %s1530 = sor.u32 256, 8
        %1531 = vbcast.lane.b32.xlu0 %v1525, %s1530
        %v1532 = vpop.permute.xlu0 %1531
        %v1533 = vlaneseq
        %v1534 = vshrl.u32 %v1533, 7
        %v1535 = vsub.s32 1, %v1534
        %v1536 = vrot.slane %v1257, %v1535
        %1538 = vbcast.lane.b32.xlu0 %v1536, 256
        %v1539 = vpop.permute.xlu0 %1538
        %s1541 = sor.u32 256, 8
        %1542 = vbcast.lane.b32.xlu0 %v1536, %s1541
        %v1543 = vpop.permute.xlu0 %1542
        %v1544 = vlaneseq
        %v1545 = vshrl.u32 %v1544, 7
        %v1546 = vsub.s32 2, %v1545
        %v1547 = vrot.slane %v1257, %v1546
        %1549 = vbcast.lane.b32.xlu0 %v1547, 256
        %v1550 = vpop.permute.xlu0 %1549
        %s1552 = sor.u32 256, 8
        %1553 = vbcast.lane.b32.xlu0 %v1547, %s1552
        %v1554 = vpop.permute.xlu0 %1553
        %v1555 = vlaneseq
        %v1556 = vshrl.u32 %v1555, 7
        %v1557 = vsub.s32 3, %v1556
        %v1558 = vrot.slane %v1257, %v1557
        %1560 = vbcast.lane.b32.xlu0 %v1558, 256
        %v1561 = vpop.permute.xlu0 %1560
        %s1563 = sor.u32 256, 8
        %1564 = vbcast.lane.b32.xlu0 %v1558, %s1563
        %v1565 = vpop.permute.xlu0 %1564
        %v1566 = vlaneseq
        %v1567 = vshrl.u32 %v1566, 7
        %v1568 = vsub.s32 4, %v1567
        %v1569 = vrot.slane %v1257, %v1568
        %1571 = vbcast.lane.b32.xlu0 %v1569, 256
        %v1572 = vpop.permute.xlu0 %1571
        %s1574 = sor.u32 256, 8
        %1575 = vbcast.lane.b32.xlu0 %v1569, %s1574
        %v1576 = vpop.permute.xlu0 %1575
        %v1577 = vlaneseq
        %v1578 = vshrl.u32 %v1577, 7
        %v1579 = vsub.s32 5, %v1578
        %v1580 = vrot.slane %v1257, %v1579
        %1582 = vbcast.lane.b32.xlu0 %v1580, 256
        %v1583 = vpop.permute.xlu0 %1582
        %s1585 = sor.u32 256, 8
        %1586 = vbcast.lane.b32.xlu0 %v1580, %s1585
        %v1587 = vpop.permute.xlu0 %1586
        %v1588 = vlaneseq
        %v1589 = vshrl.u32 %v1588, 7
        %v1590 = vsub.s32 6, %v1589
        %v1591 = vrot.slane %v1257, %v1590
        %1593 = vbcast.lane.b32.xlu0 %v1591, 256
        %v1594 = vpop.permute.xlu0 %1593
        %s1596 = sor.u32 256, 8
        %1597 = vbcast.lane.b32.xlu0 %v1591, %s1596
        %v1598 = vpop.permute.xlu0 %1597
        %v1599 = vlaneseq
        %v1600 = vshrl.u32 %v1599, 7
        %v1601 = vsub.s32 7, %v1600
        %v1602 = vrot.slane %v1257, %v1601
        %1604 = vbcast.lane.b32.xlu0 %v1602, 256
        %v1605 = vpop.permute.xlu0 %1604
        %s1607 = sor.u32 256, 8
        %1608 = vbcast.lane.b32.xlu0 %v1602, %s1607
        %v1609 = vpop.permute.xlu0 %1608
        %v1610 = vsel %vm510, %v1264, %v1440
        %v1611 = vsel %vm510, %v1268, %v1444
        %v1612 = vsel %vm510, %v1275, %v1451
        %v1613 = vsel %vm510, %v1279, %v1455
        %v1614 = vsel %vm510, %v1286, %v1462
        %v1615 = vsel %vm510, %v1290, %v1466
        %v1616 = vsel %vm510, %v1297, %v1473
        %v1617 = vsel %vm510, %v1301, %v1477
        %v1618 = vsel %vm510, %v1308, %v1484
        %v1619 = vsel %vm510, %v1312, %v1488
        %v1620 = vsel %vm510, %v1319, %v1495
        %v1621 = vsel %vm510, %v1323, %v1499
        %v1622 = vsel %vm510, %v1330, %v1506
        %v1623 = vsel %vm510, %v1334, %v1510
        %v1624 = vsel %vm510, %v1341, %v1517
        %v1625 = vsel %vm510, %v1345, %v1521
        %v1626 = vsel %vm510, %v1352, %v1528
        %v1627 = vsel %vm510, %v1356, %v1532
        %v1628 = vsel %vm510, %v1363, %v1539
        %v1629 = vsel %vm510, %v1367, %v1543
        %v1630 = vsel %vm510, %v1374, %v1550
        %v1631 = vsel %vm510, %v1378, %v1554
        %v1632 = vsel %vm510, %v1385, %v1561
        %v1633 = vsel %vm510, %v1389, %v1565
        %v1634 = vsel %vm510, %v1396, %v1572
        %v1635 = vsel %vm510, %v1400, %v1576
        %v1636 = vsel %vm510, %v1407, %v1583
        %v1637 = vsel %vm510, %v1411, %v1587
        %v1638 = vsel %vm510, %v1418, %v1594
        %v1639 = vsel %vm510, %v1422, %v1598
        %v1640 = vsel %vm510, %v1429, %v1605
        %v1641 = vsel %vm510, %v1433, %v1609
        %v1642 = vcombine.low %v1610, %v1614
        %v1643 = vcombine.high %v1610, %v1614
        %v1645 = vunpack.c.l.s4 1983009808
        %v1646 = vunpack.c.0.s8 %v1645
        %v1647 = vlaneseq
        %v1648 = vshrl.u32 %v1647, 7
        %v1649 = vsub.s32 %v1646, %v1648
        %v1650 = vrot.slane %v1642, %v1649
        %v1652 = vunpack.c.l.s4 1983009808
        %v1653 = vunpack.c.0.s8 %v1652
        %v1654 = vlaneseq
        %v1655 = vshrl.u32 %v1654, 7
        %v1656 = vsub.s32 %v1653, %v1655
        %v1657 = vrot.slane %v1643, %v1656
        %v1658 = vcombine.low %v1612, %v1616
        %v1659 = vcombine.high %v1612, %v1616
        %v1661 = vunpack.c.l.s4 1983009808
        %v1662 = vunpack.c.0.s8 %v1661
        %v1663 = vlaneseq
        %v1664 = vshrl.u32 %v1663, 7
        %v1665 = vsub.s32 %v1662, %v1664
        %v1666 = vrot.slane %v1658, %v1665
        %v1668 = vunpack.c.l.s4 1983009808
        %v1669 = vunpack.c.0.s8 %v1668
        %v1670 = vlaneseq
        %v1671 = vshrl.u32 %v1670, 7
        %v1672 = vsub.s32 %v1669, %v1671
        %v1673 = vrot.slane %v1659, %v1672
        %v1674 = vcombine.low %v1618, %v1622
        %v1675 = vcombine.high %v1618, %v1622
        %v1677 = vunpack.c.l.s4 1983009808
        %v1678 = vunpack.c.0.s8 %v1677
        %v1679 = vlaneseq
        %v1680 = vshrl.u32 %v1679, 7
        %v1681 = vsub.s32 %v1678, %v1680
        %v1682 = vrot.slane %v1674, %v1681
        %v1684 = vunpack.c.l.s4 1983009808
        %v1685 = vunpack.c.0.s8 %v1684
        %v1686 = vlaneseq
        %v1687 = vshrl.u32 %v1686, 7
        %v1688 = vsub.s32 %v1685, %v1687
        %v1689 = vrot.slane %v1675, %v1688
        %v1690 = vcombine.low %v1620, %v1624
        %v1691 = vcombine.high %v1620, %v1624
        %v1693 = vunpack.c.l.s4 1983009808
        %v1694 = vunpack.c.0.s8 %v1693
        %v1695 = vlaneseq
        %v1696 = vshrl.u32 %v1695, 7
        %v1697 = vsub.s32 %v1694, %v1696
        %v1698 = vrot.slane %v1690, %v1697
        %v1700 = vunpack.c.l.s4 1983009808
        %v1701 = vunpack.c.0.s8 %v1700
        %v1702 = vlaneseq
        %v1703 = vshrl.u32 %v1702, 7
        %v1704 = vsub.s32 %v1701, %v1703
        %v1705 = vrot.slane %v1691, %v1704
        %v1706 = vcombine.low %v1650, %v1666
        %v1707 = vcombine.high %v1650, %v1666
        %v1709 = vunpack.c.l.s4 1934713408
        %v1710 = vunpack.c.0.s8 %v1709
        %v1711 = vlaneseq
        %v1712 = vshrl.u32 %v1711, 7
        %v1713 = vsub.s32 %v1710, %v1712
        %v1714 = vrot.slane %v1706, %v1713
        %v1716 = vunpack.c.l.s4 1934713408
        %v1717 = vunpack.c.0.s8 %v1716
        %v1718 = vlaneseq
        %v1719 = vshrl.u32 %v1718, 7
        %v1720 = vsub.s32 %v1717, %v1719
        %v1721 = vrot.slane %v1707, %v1720
        %v1722 = vcombine.low %v1657, %v1673
        %v1723 = vcombine.high %v1657, %v1673
        %v1725 = vunpack.c.l.s4 1934713408
        %v1726 = vunpack.c.0.s8 %v1725
        %v1727 = vlaneseq
        %v1728 = vshrl.u32 %v1727, 7
        %v1729 = vsub.s32 %v1726, %v1728
        %v1730 = vrot.slane %v1722, %v1729
        %v1732 = vunpack.c.l.s4 1934713408
        %v1733 = vunpack.c.0.s8 %v1732
        %v1734 = vlaneseq
        %v1735 = vshrl.u32 %v1734, 7
        %v1736 = vsub.s32 %v1733, %v1735
        %v1737 = vrot.slane %v1723, %v1736
        %v1738 = vcombine.low %v1682, %v1698
        %v1739 = vcombine.high %v1682, %v1698
        %v1741 = vunpack.c.l.s4 1934713408
        %v1742 = vunpack.c.0.s8 %v1741
        %v1743 = vlaneseq
        %v1744 = vshrl.u32 %v1743, 7
        %v1745 = vsub.s32 %v1742, %v1744
        %v1746 = vrot.slane %v1738, %v1745
        %v1748 = vunpack.c.l.s4 1934713408
        %v1749 = vunpack.c.0.s8 %v1748
        %v1750 = vlaneseq
        %v1751 = vshrl.u32 %v1750, 7
        %v1752 = vsub.s32 %v1749, %v1751
        %v1753 = vrot.slane %v1739, %v1752
        %v1754 = vcombine.low %v1689, %v1705
        %v1755 = vcombine.high %v1689, %v1705
        %v1757 = vunpack.c.l.s4 1934713408
        %v1758 = vunpack.c.0.s8 %v1757
        %v1759 = vlaneseq
        %v1760 = vshrl.u32 %v1759, 7
        %v1761 = vsub.s32 %v1758, %v1760
        %v1762 = vrot.slane %v1754, %v1761
        %v1764 = vunpack.c.l.s4 1934713408
        %v1765 = vunpack.c.0.s8 %v1764
        %v1766 = vlaneseq
        %v1767 = vshrl.u32 %v1766, 7
        %v1768 = vsub.s32 %v1765, %v1767
        %v1769 = vrot.slane %v1755, %v1768
        %v1770 = vcombine.low %v1714, %v1746
        %v1771 = vcombine.high %v1714, %v1746
        %v1772 = vcombine.low %v1721, %v1753
        %v1773 = vcombine.high %v1721, %v1753
        %v1774 = vcombine.low %v1730, %v1762
        %v1775 = vcombine.high %v1730, %v1762
        %v1776 = vcombine.low %v1737, %v1769
        %v1777 = vcombine.high %v1737, %v1769
        %v1778 = vcombine.low %v1626, %v1630
        %v1779 = vcombine.high %v1626, %v1630
        %v1781 = vunpack.c.l.s4 1983009808
        %v1782 = vunpack.c.0.s8 %v1781
        %v1783 = vlaneseq
        %v1784 = vshrl.u32 %v1783, 7
        %v1785 = vsub.s32 %v1782, %v1784
        %v1786 = vrot.slane %v1778, %v1785
        %v1788 = vunpack.c.l.s4 1983009808
        %v1789 = vunpack.c.0.s8 %v1788
        %v1790 = vlaneseq
        %v1791 = vshrl.u32 %v1790, 7
        %v1792 = vsub.s32 %v1789, %v1791
        %v1793 = vrot.slane %v1779, %v1792
        %v1794 = vcombine.low %v1628, %v1632
        %v1795 = vcombine.high %v1628, %v1632
        %v1797 = vunpack.c.l.s4 1983009808
        %v1798 = vunpack.c.0.s8 %v1797
        %v1799 = vlaneseq
        %v1800 = vshrl.u32 %v1799, 7
        %v1801 = vsub.s32 %v1798, %v1800
        %v1802 = vrot.slane %v1794, %v1801
        %v1804 = vunpack.c.l.s4 1983009808
        %v1805 = vunpack.c.0.s8 %v1804
        %v1806 = vlaneseq
        %v1807 = vshrl.u32 %v1806, 7
        %v1808 = vsub.s32 %v1805, %v1807
        %v1809 = vrot.slane %v1795, %v1808
        %v1810 = vcombine.low %v1634, %v1638
        %v1811 = vcombine.high %v1634, %v1638
        %v1813 = vunpack.c.l.s4 1983009808
        %v1814 = vunpack.c.0.s8 %v1813
        %v1815 = vlaneseq
        %v1816 = vshrl.u32 %v1815, 7
        %v1817 = vsub.s32 %v1814, %v1816
        %v1818 = vrot.slane %v1810, %v1817
        %v1820 = vunpack.c.l.s4 1983009808
        %v1821 = vunpack.c.0.s8 %v1820
        %v1822 = vlaneseq
        %v1823 = vshrl.u32 %v1822, 7
        %v1824 = vsub.s32 %v1821, %v1823
        %v1825 = vrot.slane %v1811, %v1824
        %v1826 = vcombine.low %v1636, %v1640
        %v1827 = vcombine.high %v1636, %v1640
        %v1829 = vunpack.c.l.s4 1983009808
        %v1830 = vunpack.c.0.s8 %v1829
        %v1831 = vlaneseq
        %v1832 = vshrl.u32 %v1831, 7
        %v1833 = vsub.s32 %v1830, %v1832
        %v1834 = vrot.slane %v1826, %v1833
        %v1836 = vunpack.c.l.s4 1983009808
        %v1837 = vunpack.c.0.s8 %v1836
        %v1838 = vlaneseq
        %v1839 = vshrl.u32 %v1838, 7
        %v1840 = vsub.s32 %v1837, %v1839
        %v1841 = vrot.slane %v1827, %v1840
        %v1842 = vcombine.low %v1786, %v1802
        %v1843 = vcombine.high %v1786, %v1802
        %v1845 = vunpack.c.l.s4 1934713408
        %v1846 = vunpack.c.0.s8 %v1845
        %v1847 = vlaneseq
        %v1848 = vshrl.u32 %v1847, 7
        %v1849 = vsub.s32 %v1846, %v1848
        %v1850 = vrot.slane %v1842, %v1849
        %v1852 = vunpack.c.l.s4 1934713408
        %v1853 = vunpack.c.0.s8 %v1852
        %v1854 = vlaneseq
        %v1855 = vshrl.u32 %v1854, 7
        %v1856 = vsub.s32 %v1853, %v1855
        %v1857 = vrot.slane %v1843, %v1856
        %v1858 = vcombine.low %v1793, %v1809
        %v1859 = vcombine.high %v1793, %v1809
        %v1861 = vunpack.c.l.s4 1934713408
        %v1862 = vunpack.c.0.s8 %v1861
        %v1863 = vlaneseq
        %v1864 = vshrl.u32 %v1863, 7
        %v1865 = vsub.s32 %v1862, %v1864
        %v1866 = vrot.slane %v1858, %v1865
        %v1868 = vunpack.c.l.s4 1934713408
        %v1869 = vunpack.c.0.s8 %v1868
        %v1870 = vlaneseq
        %v1871 = vshrl.u32 %v1870, 7
        %v1872 = vsub.s32 %v1869, %v1871
        %v1873 = vrot.slane %v1859, %v1872
        %v1874 = vcombine.low %v1818, %v1834
        %v1875 = vcombine.high %v1818, %v1834
        %v1877 = vunpack.c.l.s4 1934713408
        %v1878 = vunpack.c.0.s8 %v1877
        %v1879 = vlaneseq
        %v1880 = vshrl.u32 %v1879, 7
        %v1881 = vsub.s32 %v1878, %v1880
        %v1882 = vrot.slane %v1874, %v1881
        %v1884 = vunpack.c.l.s4 1934713408
        %v1885 = vunpack.c.0.s8 %v1884
        %v1886 = vlaneseq
        %v1887 = vshrl.u32 %v1886, 7
        %v1888 = vsub.s32 %v1885, %v1887
        %v1889 = vrot.slane %v1875, %v1888
        %v1890 = vcombine.low %v1825, %v1841
        %v1891 = vcombine.high %v1825, %v1841
        %v1893 = vunpack.c.l.s4 1934713408
        %v1894 = vunpack.c.0.s8 %v1893
        %v1895 = vlaneseq
        %v1896 = vshrl.u32 %v1895, 7
        %v1897 = vsub.s32 %v1894, %v1896
        %v1898 = vrot.slane %v1890, %v1897
        %v1900 = vunpack.c.l.s4 1934713408
        %v1901 = vunpack.c.0.s8 %v1900
        %v1902 = vlaneseq
        %v1903 = vshrl.u32 %v1902, 7
        %v1904 = vsub.s32 %v1901, %v1903
        %v1905 = vrot.slane %v1891, %v1904
        %v1906 = vcombine.low %v1850, %v1882
        %v1907 = vcombine.high %v1850, %v1882
        %v1908 = vcombine.low %v1857, %v1889
        %v1909 = vcombine.high %v1857, %v1889
        %v1910 = vcombine.low %v1866, %v1898
        %v1911 = vcombine.high %v1866, %v1898
        %v1912 = vcombine.low %v1873, %v1905
        %v1913 = vcombine.high %v1873, %v1905
        %v1914 = vcombine.low %v1611, %v1615
        %v1915 = vcombine.high %v1611, %v1615
        %v1917 = vunpack.c.l.s4 1983009808
        %v1918 = vunpack.c.0.s8 %v1917
        %v1919 = vlaneseq
        %v1920 = vshrl.u32 %v1919, 7
        %v1921 = vsub.s32 %v1918, %v1920
        %v1922 = vrot.slane %v1914, %v1921
        %v1924 = vunpack.c.l.s4 1983009808
        %v1925 = vunpack.c.0.s8 %v1924
        %v1926 = vlaneseq
        %v1927 = vshrl.u32 %v1926, 7
        %v1928 = vsub.s32 %v1925, %v1927
        %v1929 = vrot.slane %v1915, %v1928
        %v1930 = vcombine.low %v1613, %v1617
        %v1931 = vcombine.high %v1613, %v1617
        %v1933 = vunpack.c.l.s4 1983009808
        %v1934 = vunpack.c.0.s8 %v1933
        %v1935 = vlaneseq
        %v1936 = vshrl.u32 %v1935, 7
        %v1937 = vsub.s32 %v1934, %v1936
        %v1938 = vrot.slane %v1930, %v1937
        %v1940 = vunpack.c.l.s4 1983009808
        %v1941 = vunpack.c.0.s8 %v1940
        %v1942 = vlaneseq
        %v1943 = vshrl.u32 %v1942, 7
        %v1944 = vsub.s32 %v1941, %v1943
        %v1945 = vrot.slane %v1931, %v1944
        %v1946 = vcombine.low %v1619, %v1623
        %v1947 = vcombine.high %v1619, %v1623
        %v1949 = vunpack.c.l.s4 1983009808
        %v1950 = vunpack.c.0.s8 %v1949
        %v1951 = vlaneseq
        %v1952 = vshrl.u32 %v1951, 7
        %v1953 = vsub.s32 %v1950, %v1952
        %v1954 = vrot.slane %v1946, %v1953
        %v1956 = vunpack.c.l.s4 1983009808
        %v1957 = vunpack.c.0.s8 %v1956
        %v1958 = vlaneseq
        %v1959 = vshrl.u32 %v1958, 7
        %v1960 = vsub.s32 %v1957, %v1959
        %v1961 = vrot.slane %v1947, %v1960
        %v1962 = vcombine.low %v1621, %v1625
        %v1963 = vcombine.high %v1621, %v1625
        %v1965 = vunpack.c.l.s4 1983009808
        %v1966 = vunpack.c.0.s8 %v1965
        %v1967 = vlaneseq
        %v1968 = vshrl.u32 %v1967, 7
        %v1969 = vsub.s32 %v1966, %v1968
        %v1970 = vrot.slane %v1962, %v1969
        %v1972 = vunpack.c.l.s4 1983009808
        %v1973 = vunpack.c.0.s8 %v1972
        %v1974 = vlaneseq
        %v1975 = vshrl.u32 %v1974, 7
        %v1976 = vsub.s32 %v1973, %v1975
        %v1977 = vrot.slane %v1963, %v1976
        %v1978 = vcombine.low %v1922, %v1938
        %v1979 = vcombine.high %v1922, %v1938
        %v1981 = vunpack.c.l.s4 1934713408
        %v1982 = vunpack.c.0.s8 %v1981
        %v1983 = vlaneseq
        %v1984 = vshrl.u32 %v1983, 7
        %v1985 = vsub.s32 %v1982, %v1984
        %v1986 = vrot.slane %v1978, %v1985
        %v1988 = vunpack.c.l.s4 1934713408
        %v1989 = vunpack.c.0.s8 %v1988
        %v1990 = vlaneseq
        %v1991 = vshrl.u32 %v1990, 7
        %v1992 = vsub.s32 %v1989, %v1991
        %v1993 = vrot.slane %v1979, %v1992
        %v1994 = vcombine.low %v1929, %v1945
        %v1995 = vcombine.high %v1929, %v1945
        %v1997 = vunpack.c.l.s4 1934713408
        %v1998 = vunpack.c.0.s8 %v1997
        %v1999 = vlaneseq
        %v2000 = vshrl.u32 %v1999, 7
        %v2001 = vsub.s32 %v1998, %v2000
        %v2002 = vrot.slane %v1994, %v2001
        %v2004 = vunpack.c.l.s4 1934713408
        %v2005 = vunpack.c.0.s8 %v2004
        %v2006 = vlaneseq
        %v2007 = vshrl.u32 %v2006, 7
        %v2008 = vsub.s32 %v2005, %v2007
        %v2009 = vrot.slane %v1995, %v2008
        %v2010 = vcombine.low %v1954, %v1970
        %v2011 = vcombine.high %v1954, %v1970
        %v2013 = vunpack.c.l.s4 1934713408
        %v2014 = vunpack.c.0.s8 %v2013
        %v2015 = vlaneseq
        %v2016 = vshrl.u32 %v2015, 7
        %v2017 = vsub.s32 %v2014, %v2016
        %v2018 = vrot.slane %v2010, %v2017
        %v2020 = vunpack.c.l.s4 1934713408
        %v2021 = vunpack.c.0.s8 %v2020
        %v2022 = vlaneseq
        %v2023 = vshrl.u32 %v2022, 7
        %v2024 = vsub.s32 %v2021, %v2023
        %v2025 = vrot.slane %v2011, %v2024
        %v2026 = vcombine.low %v1961, %v1977
        %v2027 = vcombine.high %v1961, %v1977
        %v2029 = vunpack.c.l.s4 1934713408
        %v2030 = vunpack.c.0.s8 %v2029
        %v2031 = vlaneseq
        %v2032 = vshrl.u32 %v2031, 7
        %v2033 = vsub.s32 %v2030, %v2032
        %v2034 = vrot.slane %v2026, %v2033
        %v2036 = vunpack.c.l.s4 1934713408
        %v2037 = vunpack.c.0.s8 %v2036
        %v2038 = vlaneseq
        %v2039 = vshrl.u32 %v2038, 7
        %v2040 = vsub.s32 %v2037, %v2039
        %v2041 = vrot.slane %v2027, %v2040
        %v2042 = vcombine.low %v1986, %v2018
        %v2043 = vcombine.high %v1986, %v2018
        %v2044 = vcombine.low %v1993, %v2025
        %v2045 = vcombine.high %v1993, %v2025
        %v2046 = vcombine.low %v2002, %v2034
        %v2047 = vcombine.high %v2002, %v2034
        %v2048 = vcombine.low %v2009, %v2041
        %v2049 = vcombine.high %v2009, %v2041
        %v2050 = vcombine.low %v1627, %v1631
        %v2051 = vcombine.high %v1627, %v1631
        %v2053 = vunpack.c.l.s4 1983009808
        %v2054 = vunpack.c.0.s8 %v2053
        %v2055 = vlaneseq
        %v2056 = vshrl.u32 %v2055, 7
        %v2057 = vsub.s32 %v2054, %v2056
        %v2058 = vrot.slane %v2050, %v2057
        %v2060 = vunpack.c.l.s4 1983009808
        %v2061 = vunpack.c.0.s8 %v2060
        %v2062 = vlaneseq
        %v2063 = vshrl.u32 %v2062, 7
        %v2064 = vsub.s32 %v2061, %v2063
        %v2065 = vrot.slane %v2051, %v2064
        %v2066 = vcombine.low %v1629, %v1633
        %v2067 = vcombine.high %v1629, %v1633
        %v2069 = vunpack.c.l.s4 1983009808
        %v2070 = vunpack.c.0.s8 %v2069
        %v2071 = vlaneseq
        %v2072 = vshrl.u32 %v2071, 7
        %v2073 = vsub.s32 %v2070, %v2072
        %v2074 = vrot.slane %v2066, %v2073
        %v2076 = vunpack.c.l.s4 1983009808
        %v2077 = vunpack.c.0.s8 %v2076
        %v2078 = vlaneseq
        %v2079 = vshrl.u32 %v2078, 7
        %v2080 = vsub.s32 %v2077, %v2079
        %v2081 = vrot.slane %v2067, %v2080
        %v2082 = vcombine.low %v1635, %v1639
        %v2083 = vcombine.high %v1635, %v1639
        %v2085 = vunpack.c.l.s4 1983009808
        %v2086 = vunpack.c.0.s8 %v2085
        %v2087 = vlaneseq
        %v2088 = vshrl.u32 %v2087, 7
        %v2089 = vsub.s32 %v2086, %v2088
        %v2090 = vrot.slane %v2082, %v2089
        %v2092 = vunpack.c.l.s4 1983009808
        %v2093 = vunpack.c.0.s8 %v2092
        %v2094 = vlaneseq
        %v2095 = vshrl.u32 %v2094, 7
        %v2096 = vsub.s32 %v2093, %v2095
        %v2097 = vrot.slane %v2083, %v2096
        %v2098 = vcombine.low %v1637, %v1641
        %v2099 = vcombine.high %v1637, %v1641
        %v2101 = vunpack.c.l.s4 1983009808
        %v2102 = vunpack.c.0.s8 %v2101
        %v2103 = vlaneseq
        %v2104 = vshrl.u32 %v2103, 7
        %v2105 = vsub.s32 %v2102, %v2104
        %v2106 = vrot.slane %v2098, %v2105
        %v2108 = vunpack.c.l.s4 1983009808
        %v2109 = vunpack.c.0.s8 %v2108
        %v2110 = vlaneseq
        %v2111 = vshrl.u32 %v2110, 7
        %v2112 = vsub.s32 %v2109, %v2111
        %v2113 = vrot.slane %v2099, %v2112
        %v2114 = vcombine.low %v2058, %v2074
        %v2115 = vcombine.high %v2058, %v2074
        %v2117 = vunpack.c.l.s4 1934713408
        %v2118 = vunpack.c.0.s8 %v2117
        %v2119 = vlaneseq
        %v2120 = vshrl.u32 %v2119, 7
        %v2121 = vsub.s32 %v2118, %v2120
        %v2122 = vrot.slane %v2114, %v2121
        %v2124 = vunpack.c.l.s4 1934713408
        %v2125 = vunpack.c.0.s8 %v2124
        %v2126 = vlaneseq
        %v2127 = vshrl.u32 %v2126, 7
        %v2128 = vsub.s32 %v2125, %v2127
        %v2129 = vrot.slane %v2115, %v2128
        %v2130 = vcombine.low %v2065, %v2081
        %v2131 = vcombine.high %v2065, %v2081
        %v2133 = vunpack.c.l.s4 1934713408
        %v2134 = vunpack.c.0.s8 %v2133
        %v2135 = vlaneseq
        %v2136 = vshrl.u32 %v2135, 7
        %v2137 = vsub.s32 %v2134, %v2136
        %v2138 = vrot.slane %v2130, %v2137
        %v2140 = vunpack.c.l.s4 1934713408
        %v2141 = vunpack.c.0.s8 %v2140
        %v2142 = vlaneseq
        %v2143 = vshrl.u32 %v2142, 7
        %v2144 = vsub.s32 %v2141, %v2143
        %v2145 = vrot.slane %v2131, %v2144
        %v2146 = vcombine.low %v2090, %v2106
        %v2147 = vcombine.high %v2090, %v2106
        %v2149 = vunpack.c.l.s4 1934713408
        %v2150 = vunpack.c.0.s8 %v2149
        %v2151 = vlaneseq
        %v2152 = vshrl.u32 %v2151, 7
        %v2153 = vsub.s32 %v2150, %v2152
        %v2154 = vrot.slane %v2146, %v2153
        %v2156 = vunpack.c.l.s4 1934713408
        %v2157 = vunpack.c.0.s8 %v2156
        %v2158 = vlaneseq
        %v2159 = vshrl.u32 %v2158, 7
        %v2160 = vsub.s32 %v2157, %v2159
        %v2161 = vrot.slane %v2147, %v2160
        %v2162 = vcombine.low %v2097, %v2113
        %v2163 = vcombine.high %v2097, %v2113
        %v2165 = vunpack.c.l.s4 1934713408
        %v2166 = vunpack.c.0.s8 %v2165
        %v2167 = vlaneseq
        %v2168 = vshrl.u32 %v2167, 7
        %v2169 = vsub.s32 %v2166, %v2168
        %v2170 = vrot.slane %v2162, %v2169
        %v2172 = vunpack.c.l.s4 1934713408
        %v2173 = vunpack.c.0.s8 %v2172
        %v2174 = vlaneseq
        %v2175 = vshrl.u32 %v2174, 7
        %v2176 = vsub.s32 %v2173, %v2175
        %v2177 = vrot.slane %v2163, %v2176
        %v2178 = vcombine.low %v2122, %v2154
        %v2179 = vcombine.high %v2122, %v2154
        %v2180 = vcombine.low %v2129, %v2161
        %v2181 = vcombine.high %v2129, %v2161
        %v2182 = vcombine.low %v2138, %v2170
        %v2183 = vcombine.high %v2138, %v2170
        %v2184 = vcombine.low %v2145, %v2177
        %v2185 = vcombine.high %v2145, %v2177
        %2188 = vrot.lane.b32.xlu0 %v1771, 2
        %v2189 = vpop.permute.xlu0 %2188
        %2190 = vrot.lane.b32.xlu0 %v1907, 2
        %v2191 = vpop.permute.xlu0 %2190
        %2196 = vrot.lane.b32.xlu0 %v1772, 4
        %v2197 = vpop.permute.xlu0 %2196
        %2198 = vrot.lane.b32.xlu0 %v1908, 4
        %v2199 = vpop.permute.xlu0 %2198
        %2204 = vrot.lane.b32.xlu0 %v1773, 6
        %v2205 = vpop.permute.xlu0 %2204
        %2206 = vrot.lane.b32.xlu0 %v1909, 6
        %v2207 = vpop.permute.xlu0 %2206
        %2212 = vrot.lane.b32.xlu0 %v1774, 8
        %v2213 = vpop.permute.xlu0 %2212
        %2214 = vrot.lane.b32.xlu0 %v1910, 8
        %v2215 = vpop.permute.xlu0 %2214
        %2220 = vrot.lane.b32.xlu0 %v1775, 10
        %v2221 = vpop.permute.xlu0 %2220
        %2222 = vrot.lane.b32.xlu0 %v1911, 10
        %v2223 = vpop.permute.xlu0 %2222
        %2228 = vrot.lane.b32.xlu0 %v1776, 12
        %v2229 = vpop.permute.xlu0 %2228
        %2230 = vrot.lane.b32.xlu0 %v1912, 12
        %v2231 = vpop.permute.xlu0 %2230
        %2236 = vrot.lane.b32.xlu0 %v1777, 14
        %v2237 = vpop.permute.xlu0 %2236
        %2238 = vrot.lane.b32.xlu0 %v1913, 14
        %v2239 = vpop.permute.xlu0 %2238
        %2244 = vrot.lane.b32.xlu0 %v2042, 16
        %v2245 = vpop.permute.xlu0 %2244
        %2246 = vrot.lane.b32.xlu0 %v2178, 16
        %v2247 = vpop.permute.xlu0 %2246
        %2252 = vrot.lane.b32.xlu0 %v2043, 18
        %v2253 = vpop.permute.xlu0 %2252
        %2254 = vrot.lane.b32.xlu0 %v2179, 18
        %v2255 = vpop.permute.xlu0 %2254
        %2260 = vrot.lane.b32.xlu0 %v2044, 20
        %v2261 = vpop.permute.xlu0 %2260
        %2262 = vrot.lane.b32.xlu0 %v2180, 20
        %v2263 = vpop.permute.xlu0 %2262
        %2268 = vrot.lane.b32.xlu0 %v2045, 22
        %v2269 = vpop.permute.xlu0 %2268
        %2270 = vrot.lane.b32.xlu0 %v2181, 22
        %v2271 = vpop.permute.xlu0 %2270
        %2276 = vrot.lane.b32.xlu0 %v2046, 24
        %v2277 = vpop.permute.xlu0 %2276
        %2278 = vrot.lane.b32.xlu0 %v2182, 24
        %v2279 = vpop.permute.xlu0 %2278
        %2284 = vrot.lane.b32.xlu0 %v2047, 26
        %v2285 = vpop.permute.xlu0 %2284
        %2286 = vrot.lane.b32.xlu0 %v2183, 26
        %v2287 = vpop.permute.xlu0 %2286
        %2292 = vrot.lane.b32.xlu0 %v2048, 28
        %v2293 = vpop.permute.xlu0 %2292
        %2294 = vrot.lane.b32.xlu0 %v2184, 28
        %v2295 = vpop.permute.xlu0 %2294
        %2300 = vrot.lane.b32.xlu0 %v2049, 30
        %v2301 = vpop.permute.xlu0 %2300
        %2302 = vrot.lane.b32.xlu0 %v2185, 30
        %v2303 = vpop.permute.xlu0 %2302
        %v2306 = vsel %vm1207, %v1770, %v2189
        %v2307 = vsel %vm1207, %v1906, %v2191
        %v2308 = vsel %vm1210, %v2306, %v2197
        %v2309 = vsel %vm1210, %v2307, %v2199
        %v2310 = vsel %vm1213, %v2308, %v2205
        %v2311 = vsel %vm1213, %v2309, %v2207
        %v2312 = vsel %vm1216, %v2310, %v2213
        %v2313 = vsel %vm1216, %v2311, %v2215
        %v2314 = vsel %vm1219, %v2312, %v2221
        %v2315 = vsel %vm1219, %v2313, %v2223
        %v2316 = vsel %vm1222, %v2314, %v2229
        %v2317 = vsel %vm1222, %v2315, %v2231
        %v2318 = vsel %vm1225, %v2316, %v2237
        %v2319 = vsel %vm1225, %v2317, %v2239
        %v2320 = vsel %vm1228, %v2318, %v2245
        %v2321 = vsel %vm1228, %v2319, %v2247
        %v2322 = vsel %vm1231, %v2320, %v2253
        %v2323 = vsel %vm1231, %v2321, %v2255
        %v2324 = vsel %vm1234, %v2322, %v2261
        %v2325 = vsel %vm1234, %v2323, %v2263
        %v2326 = vsel %vm1237, %v2324, %v2269
        %v2327 = vsel %vm1237, %v2325, %v2271
        %v2328 = vsel %vm1240, %v2326, %v2277
        %v2329 = vsel %vm1240, %v2327, %v2279
        %v2330 = vsel %vm1243, %v2328, %v2285
        %v2331 = vsel %vm1243, %v2329, %v2287
        %v2332 = vsel %vm1246, %v2330, %v2293
        %v2333 = vsel %vm1246, %v2331, %v2295
        %v2334 = vsel %vm1249, %v2332, %v2301
        %v2335 = vsel %vm1249, %v2333, %v2303
        %2338 = vrot.lane.b32.xlu0 %v2334, 32
        %v2339 = vpop.permute.xlu0 %2338
        %2340 = vrot.lane.b32.xlu0 %v2335, 32
        %v2341 = vpop.permute.xlu0 %2340
        %vm2344 = vcmask 261120
        %v2345 = vsel %vm2344, %v1250, %v2339
        %v2346 = vsel %vm2344, %v1251, %v2341
        %vm2347 = vcmask 523264
        %2348 = vst.msk [vmem:[%s152] sm:$0xff] %vm2347, %v2345
        %2349 = vst.msk [vmem:[%s152 + $0x8] sm:$0xff] %vm2347, %v2346
        %s2350 = sand.u32 %s68, 1
        %s2351 = scalar_lea.sflag [#allocation4], %s2350
        %s2352 = sand.u32 %s68, 1
        %s2353 = smul.addr %s2352, 16
        %s2354 = scalar_lea.vmem [#allocation5], %s2353
        // Predicated region
        $region29: #{tpu_custom_call.1} parent=23 // pred_check
          %p2355 = pneg %p78
        $region30: #{tpu_custom_call.1} parent=23 // pred_check_branch
          %2357 = sbr.rel (%p2355) target = $region32
        $region31: #{tpu_custom_call.1} parent=23 // pred_region
          %s2359 = ssub.s32 256, 256
          %2360 = vsyncadd %s2351, %s2359
          %s2361 = smul.addr %s23, 2
          %s2362 = smul.addr %s22, 2
          %s2363 = sadd.s32 %s2361, %s2362
          %s2364 = smul.addr %s2363, 128
          %s2365 = scalar_lea.hbm %s1, %s2364
          %s2366 = sshll.u32 %s2354, 4
          %s2367 = int_to_ptr.vmem [resolvable:$true] %s2366
          %2372 = dma.vmem_to_hbm [thread:$0]  %s2367, 256, %s2365, %s2351, 128, 128, 8
        $region32: #{tpu_custom_call.1} parent=23 // pred_fallthru
          _
      $region24: #{tpu_custom_call.1} parent=5 // pred_fallthru
        _
      %p2373 = scmp.le.s32.totalorder 2, %s13
      // Predicated region
      $region33: #{tpu_custom_call.1} parent=5 // pred_check
        %p2374 = pneg %p2373
      $region34: #{tpu_custom_call.1} parent=5 // pred_check_branch
        %2376 = sbr.rel (%p2374) target = $region36
      $region35: #{tpu_custom_call.1} parent=5 // pred_region
        %s2377 = ssub.s32 %s13, 2
        // Predicated region
        $region37: #{tpu_custom_call.1} parent=35 // pred_check
          %p2378 = pneg %p84
        $region38: #{tpu_custom_call.1} parent=35 // pred_check_branch
          %2380 = sbr.rel (%p2378) target = $region40
        $region39: #{tpu_custom_call.1} parent=35 // pred_region
          %s2381 = sand.u32 %s69, 1
          %s2382 = scalar_lea.sflag [#allocation4], %s2381
          %s2383 = sand.u32 %s69, 1
          %s2384 = smul.addr %s2383, 16
          %s2385 = scalar_lea.vmem [#allocation5], %s2384
          %2386 = dma.done %s2382, 256
        $region40: #{tpu_custom_call.1} parent=35 // pred_fallthru
          _
      $region36: #{tpu_custom_call.1} parent=5 // pred_fallthru
        _
    $region6: #{tpu_custom_call.1} parent=1 // loop_footer
      %s17 = sadd.s32 1, %s13
    $region7: #{tpu_custom_call.1} parent=1 // loop_footer_branch
      %12 = sbr.rel target = $region3
    $region8: #{tpu_custom_call.1} parent=1 // loop_exit
      _
    %2387 = vsyncpa [#allocation3], 1
    %s2388 = scalar_lea.sflag [#allocation3], 1
    %2389 = vsyncpa %s2388, 1
    %2390 = vsyncpa [#allocation4], 1
    %s2391 = scalar_lea.sflag [#allocation4], 1
    %2392 = vsyncpa %s2391, 1

</llo_original>
